<compile_context>
chip_gen: v5e
topology: v5e:2x2
jax: 0.10.0
libtpu: 0.0.40
codegen_flags: <defaults>
</compile_context>

<pallas_src>
import math
from functools import partial

import jax
import jax.numpy as jnp
from jax.experimental import pallas as pl
from jax.experimental.pallas import tpu as pltpu

SMEM = pltpu.MemorySpace.SMEM


def _round_up(a, m):
    return ((a + m - 1) // m) * m


# ----------------------------- kernel 1 -------------------------------------
# Fused: encoder (streamed over F) -> reparameterize -> beta-TC loss
#        -> batched invert-equiv transforms.


def fused_enc_betatc_invequ_kernel(
        x_ref, wenc_ref, benc_ref, eps_ref, winv_ref, binv_ref,
        z_ref, mu_ref, lv_ref, newz_ref, nzmean_ref, stats_ref,
        h_acc,
        *, batch, latent, num_inv_equ, dataset_size):
    B = batch
    L = latent
    log2pi = math.log(2.0 * math.pi)

    step = pl.program_id(0)

    @pl.when(step == 0)
    def _init():
        h_acc[...] = jnp.zeros_like(h_acc)

    # ---- streamed encoder contraction over F (fused mu|logvar head) --------
    h_acc[...] += jnp.dot(x_ref[...], wenc_ref[...],
                          preferred_element_type=jnp.float32)

    @pl.when(step == pl.num_programs(0) - 1)
    def _finalize():
        h = h_acc[...] + benc_ref[...]                 # (B, 2L), one lane tile
        mu = h[:, :L]                                  # cheap lane slice
        lv = h[:, L:2 * L]
        z = mu + jnp.exp(0.5 * lv) * eps_ref[...]
        z_ref[...] = z
        mu_ref[...] = mu
        lv_ref[...] = lv

        inv_var = jnp.exp(-lv)                         # (B, L), hoisted EUP work

        # per-sample log q(z|x), log p(z)
        logqzx = jnp.sum(-0.5 * (log2pi + lv) - 0.5 * (z - mu) ** 2 * inv_var,
                         axis=1, keepdims=True)        # (B, 1)
        logpz = jnp.sum(-0.5 * log2pi - 0.5 * z * z, axis=1, keepdims=True)

        # log importance weights built in-kernel (3 constants, no HBM input)
        strat = (dataset_size - B + 1) / (dataset_size * (B - 1))
        log_inv_bm1 = math.log(1.0 / (B - 1))
        log_inv_m = math.log(1.0 / dataset_size)
        log_strat = math.log(strat)
        row = jax.lax.broadcasted_iota(jnp.int32, (B, B), 0)
        col = jax.lax.broadcasted_iota(jnp.int32, (B, B), 1)
        logiw = jnp.full((B, B), log_inv_bm1, jnp.float32)
        logiw = jnp.where(col == 0,
                          jnp.where(row == B - 2, log_strat, log_inv_m), logiw)
        logiw = jnp.where(col == 1, log_strat, logiw)

        # ---- per-latent-dim (B,B) slabs: online logsumexp for logqz_prod and
        # accumulated joint density s for logqz (no (B,L,B) tensor).
        muT = jnp.transpose(mu)                        # (L, B), tiny
        lvT = jnp.transpose(lv)
        ivT = jnp.transpose(inv_var)
        s_sum = jnp.zeros((B, B), jnp.float32)
        logqz_prod = jnp.zeros((B, 1), jnp.float32)
        for d in range(L):                             # static unroll, L small
            norm_row = -0.5 * (log2pi + lvT[d:d + 1, :])            # (1, B)
            g = (norm_row
                 - 0.5 * (z[:, d:d + 1] - muT[d:d + 1, :]) ** 2
                 * ivT[d:d + 1, :])                                  # (B, B)
            s_sum = s_sum + g
            mat = g + logiw
            m1 = jnp.max(mat, axis=1, keepdims=True)
            logqz_prod = (logqz_prod + m1
                          + jnp.log(jnp.sum(jnp.exp(mat - m1),
                                            axis=1, keepdims=True)))

        s = s_sum + logiw                              # (B, B) joint density
        m2 = jnp.max(s, axis=1, keepdims=True)
        logqz = jnp.log(jnp.sum(jnp.exp(s - m2), axis=1, keepdims=True)) + m2

        inv_b = 1.0 / B
        stats_ref[0] = jnp.sum(logqzx - logqz) * inv_b        # mi
        stats_ref[1] = jnp.sum(logqz - logqz_prod) * inv_b    # tc
        stats_ref[2] = jnp.sum(logqz_prod - logpz) * inv_b    # kld

        # ---- invert-equiv transforms: one batched (B,L)x(L,K*L) matmul ------
        nz_all = (jnp.dot(z, winv_ref[...], preferred_element_type=jnp.float32)
                  + binv_ref[...])                     # (B, K*L)
        nz_sum = jnp.zeros((B, L), jnp.float32)
        for kk in range(num_inv_equ):                  # slices within one tile
            nz = nz_all[:, kk * L:(kk + 1) * L]
            newz_ref[kk] = nz
            nz_sum = nz_sum + nz
        nzmean_ref[...] = nz_sum * (1.0 / num_inv_equ)


# ----------------------------- kernel 2 -------------------------------------
# Decoder + reconstruction loss, tiled over F; per-block partial SSE so the
# F axis can be "parallel" (split across TensorCores on v7x).


def decoder_recon_kernel(nz_ref, w_ref, b_ref, x_ref, recon_ref, sse_ref):
    recon = (jnp.dot(nz_ref[...], w_ref[...], preferred_element_type=jnp.float32)
             + b_ref[...])
    # TODO(synk): cast to bfloat16 here if downstream tolerates it (halves the
    # recon HBM write, ~25-30% on this mem-bound kernel).
    recon_ref[...] = recon
    diff = recon - x_ref[...]
    sse_ref[0] = jnp.sum(diff * diff)


# ----------------------------- wrapper --------------------------------------


def mipet_betatcvae_no_reg_forward(x, params, *, dataset_size, num_inv_equ, latent):
    B, C, H, W = x.shape
    F_ = C * H * W
    x_flat = x.reshape(B, F_).astype(jnp.float32)

    # Feature tile: 512-wide streamed tiles (mem-bound roofline sweet spot),
    # pad F to a tile multiple so every shape keeps the streamed pipeline.
    TF = 512 if F_ > 512 else _round_up(F_, 128)
    F_pad = _round_up(F_, TF)
    nblk = F_pad // TF
    pad = F_pad - F_

    # fused encoder head + packed invert-equiv weights (cheap host-side plumbing)
    w_enc = jnp.concatenate([params['w_mu'], params['w_lv']], axis=1)   # (F, 2L)
    b_enc = jnp.concatenate([params['b_mu'], params['b_lv']], axis=1)   # (1, 2L)
    w_inv_packed = jnp.transpose(params['w_inv'], (1, 0, 2)).reshape(
        latent, num_inv_equ * latent)                                   # (L, K*L)
    b_inv_packed = params['b_inv'].reshape(1, num_inv_equ * latent)     # (1, K*L)
    w_dec = params['w_dec']
    b_dec = params['b_dec']

    if pad:
        x_flat_p = jnp.pad(x_flat, ((0, 0), (0, pad)))
        w_enc_p = jnp.pad(w_enc, ((0, pad), (0, 0)))
        w_dec_p = jnp.pad(w_dec, ((0, 0), (0, pad)))
        b_dec_p = jnp.pad(b_dec, ((0, 0), (0, pad)))
    else:
        x_flat_p, w_enc_p, w_dec_p, b_dec_p = x_flat, w_enc, w_dec, b_dec

    # ---- kernel 1: streamed encoder + beta-TC + invert-equiv ---------------
    flops1 = int(2 * B * F_pad * 2 * latent + 10 * B * B * latent
                 + 2 * B * latent * num_inv_equ * latent)
    trans1 = int(2 * B * latent + (latent + 1) * B * B + B * (latent + 1))
    bytes1 = int(4 * (B * F_pad + F_pad * 2 * latent + 2 * latent + B * latent
                      + latent * num_inv_equ * latent + num_inv_equ * latent
                      + (4 + num_inv_equ) * B * latent + 3))

    z, mu, logvar, new_zs, nz_mean, stats = pl.pallas_call(
        partial(fused_enc_betatc_invequ_kernel, batch=B, latent=latent,
                num_inv_equ=num_inv_equ, dataset_size=dataset_size),
        grid=(nblk,),
        out_shape=(jax.ShapeDtypeStruct((B, latent), jnp.float32),
                   jax.ShapeDtypeStruct((B, latent), jnp.float32),
                   jax.ShapeDtypeStruct((B, latent), jnp.float32),
                   jax.ShapeDtypeStruct((num_inv_equ, B, latent), jnp.float32),
                   jax.ShapeDtypeStruct((B, latent), jnp.float32),
                   jax.ShapeDtypeStruct((3,), jnp.float32)),
        in_specs=[
            pl.BlockSpec((B, TF), lambda k: (0, k)),                    # x (streamed)
            pl.BlockSpec((TF, 2 * latent), lambda k: (k, 0)),           # w_enc (streamed)
            pl.BlockSpec((1, 2 * latent), lambda k: (0, 0)),            # b_enc
            pl.BlockSpec((B, latent), lambda k: (0, 0)),                # eps
            pl.BlockSpec((latent, num_inv_equ * latent), lambda k: (0, 0)),
            pl.BlockSpec((1, num_inv_equ * latent), lambda k: (0, 0)),
        ],
        out_specs=(
            pl.BlockSpec((B, latent), lambda k: (0, 0)),
            pl.BlockSpec((B, latent), lambda k: (0, 0)),
            pl.BlockSpec((B, latent), lambda k: (0, 0)),
            pl.BlockSpec((num_inv_equ, B, latent), lambda k: (0, 0, 0)),
            pl.BlockSpec((B, latent), lambda k: (0, 0)),
            pl.BlockSpec((3,), lambda k: (0,), memory_space=SMEM),
        ),
        scratch_shapes=[pltpu.VMEM((B, 2 * latent), jnp.float32)],
        compiler_params=pltpu.CompilerParams(
            dimension_semantics=("arbitrary",)),
        cost_estimate=pl.CostEstimate(flops=flops1, transcendentals=trans1,
                                      bytes_accessed=bytes1),
    )(x_flat_p, w_enc_p, b_enc, params['eps'], w_inv_packed, b_inv_packed)
    mi, tc, kld = stats[0], stats[1], stats[2]

    # ---- kernel 2: decoder + reconstruction loss, F-parallel tiles ---------
    flops2 = int(2 * B * latent * F_pad + 3 * B * F_pad)
    bytes2 = int(4 * (B * latent + latent * F_pad + F_pad + 2 * B * F_pad + nblk))

    recon_flat, sse_parts = pl.pallas_call(
        decoder_recon_kernel,
        grid=(nblk,),
        out_shape=(jax.ShapeDtypeStruct((B, F_pad), jnp.float32),
                   jax.ShapeDtypeStruct((nblk,), jnp.float32)),
        in_specs=[pl.BlockSpec((B, latent), lambda j: (0, 0)),
                  pl.BlockSpec((latent, TF), lambda j: (0, j)),
                  pl.BlockSpec((1, TF), lambda j: (0, j)),
                  pl.BlockSpec((B, TF), lambda j: (0, j))],
        out_specs=(pl.BlockSpec((B, TF), lambda j: (0, j)),
                   pl.BlockSpec((1,), lambda j: (j,), memory_space=SMEM)),
        compiler_params=pltpu.CompilerParams(dimension_semantics=("parallel",)),
        cost_estimate=pl.CostEstimate(flops=flops2, transcendentals=0,
                                      bytes_accessed=bytes2),
    )(nz_mean, w_dec_p, b_dec_p, x_flat_p)

    recon = recon_flat[:, :F_].reshape(B, C, H, W)
    reconst_err = jnp.sum(sse_parts) / B      # loss_fn == MSE(sum) / batch

    result = {'elbo': {}, 'obj': {}, 'id': {}}
    result['obj']['reconst'] = reconst_err[None]
    result['obj']['kld'] = kld[None]
    result['obj']['mi'] = mi[None]
    result['obj']['tc'] = tc[None]
    # torch sets the python float 0.0; shaped zero keeps the pytree consistent
    result['obj']['reg'] = jnp.zeros((1,), jnp.float32)
    result['obj']['origin_kld'] = kld[None]

    enc_output = (z, mu, logvar)
    new_output = (recon, new_zs)
    return (result,) + (enc_output,) + (new_output,)


# ----------------------------- demo -----------------------------------------

if __name__ == "__main__":
    # config
    B, C, H, W = 4, 1, 16, 16
    F_ = C * H * W
    LATENT = 16
    NUM_INV_EQU = 3
    DATASET_SIZE = 1000

    key = jax.random.PRNGKey(0)
    k1, k1b, k2, k2b, k3, k4, k5, k6, ke, kx = jax.random.split(key, 10)

    params = {
        # encoder mu / logvar heads (fused into one (F, 2L) matmul in-wrapper)
        'w_mu': 0.05 * jax.random.normal(k1, (F_, LATENT), jnp.float32),
        'w_lv': 0.05 * jax.random.normal(k1b, (F_, LATENT), jnp.float32),
        'b_mu': 0.01 * jax.random.normal(k2, (1, LATENT), jnp.float32),
        'b_lv': 0.01 * jax.random.normal(k2b, (1, LATENT), jnp.float32),
        'w_inv': 0.30 * jax.random.normal(k3, (NUM_INV_EQU, LATENT, LATENT), jnp.float32),
        'b_inv': 0.01 * jax.random.normal(k4, (NUM_INV_EQU, 1, LATENT), jnp.float32),
        'w_dec': 0.05 * jax.random.normal(k5, (LATENT, F_), jnp.float32),
        'b_dec': 0.01 * jax.random.normal(k6, (1, F_), jnp.float32),
        # deterministic reparameterization noise
        'eps': jax.random.normal(ke, (B, LATENT), jnp.float32),
    }

    x = jax.random.normal(kx, (B, C, H, W), jnp.float32)

    result, enc_output, new_output = mipet_betatcvae_no_reg_forward(
        x, params, dataset_size=DATASET_SIZE, num_inv_equ=NUM_INV_EQU, latent=LATENT)

    jax.block_until_ready((result['obj']['reconst'], result['obj']['kld'],
                           result['obj']['mi'], result['obj']['tc'],
                           result['obj']['reg'], enc_output, new_output))
    print("KERNEL_OK")
</pallas_src>

<mosaic_0001>
module attributes {stable_mosaic.version = 11 : i64} {
  func.func @fused_enc_betatc_invequ_kernel(%arg0: i32, %arg1: memref<4x256xf32, #tpu.memory_space<vmem>>, %arg2: memref<256x32xf32, #tpu.memory_space<vmem>>, %arg3: memref<1x32xf32, #tpu.memory_space<vmem>>, %arg4: memref<4x16xf32, #tpu.memory_space<vmem>>, %arg5: memref<16x48xf32, #tpu.memory_space<vmem>>, %arg6: memref<1x48xf32, #tpu.memory_space<vmem>>, %arg7: memref<4x16xf32, #tpu.memory_space<vmem>>, %arg8: memref<4x16xf32, #tpu.memory_space<vmem>>, %arg9: memref<4x16xf32, #tpu.memory_space<vmem>>, %arg10: memref<3x4x16xf32, #tpu.memory_space<vmem>>, %arg11: memref<4x16xf32, #tpu.memory_space<vmem>>, %arg12: memref<3xf32, #tpu.memory_space<smem>>, %arg13: memref<4x32xf32, #tpu.memory_space<vmem>>) attributes {dimension_semantics = [#tpu.dimension_semantics<arbitrary>], iteration_bounds = array<i64: 1>, scalar_prefetch = 0 : i64, scratch_operands = 1 : i64, tpu.core_type = #tpu.core_type<tc>, window_params = [{transform_indices = @transform_0, window_bounds = array<i64: 4, 256>}, {transform_indices = @transform_1, window_bounds = array<i64: 256, 32>}, {pipeline_mode = #tpu.pipeline_mode<synchronous>, transform_indices = @transform_2, window_bounds = array<i64: 1, 32>}, {pipeline_mode = #tpu.pipeline_mode<synchronous>, transform_indices = @transform_3, window_bounds = array<i64: 4, 16>}, {pipeline_mode = #tpu.pipeline_mode<synchronous>, transform_indices = @transform_4, window_bounds = array<i64: 16, 48>}, {pipeline_mode = #tpu.pipeline_mode<synchronous>, transform_indices = @transform_5, window_bounds = array<i64: 1, 48>}, {pipeline_mode = #tpu.pipeline_mode<synchronous>, transform_indices = @transform_6, window_bounds = array<i64: 4, 16>}, {pipeline_mode = #tpu.pipeline_mode<synchronous>, transform_indices = @transform_7, window_bounds = array<i64: 4, 16>}, {pipeline_mode = #tpu.pipeline_mode<synchronous>, transform_indices = @transform_8, window_bounds = array<i64: 4, 16>}, {pipeline_mode = #tpu.pipeline_mode<synchronous>, transform_indices = @transform_9, window_bounds = array<i64: 3, 4, 16>}, {pipeline_mode = #tpu.pipeline_mode<synchronous>, transform_indices = @transform_10, window_bounds = array<i64: 4, 16>}, {transform_indices = @transform_11, window_bounds = array<i64: 3>}]} {
    %c0_i32 = arith.constant 0 : i32
    %0 = arith.cmpi eq, %arg0, %c0_i32 : i32
    %1 = arith.extui %0 : i1 to i32
    %c0_i32_0 = arith.constant 0 : i32
    %2 = arith.cmpi ne, %1, %c0_i32_0 : i32
    scf.if %2 {
      %cst_10 = arith.constant 0.000000e+00 : f32
      %12 = vector.broadcast %cst_10 : f32 to vector<4x32xf32>
      %c0_11 = arith.constant 0 : index
      %c0_12 = arith.constant 0 : index
      %13 = vector.load %arg13[%c0_11, %c0_12] : memref<4x32xf32, #tpu.memory_space<vmem>>, vector<4x32xf32>
      tpu.vector_store %arg13[%c0_11, %c0_12], %12 {strides = array<i32>} : memref<4x32xf32, #tpu.memory_space<vmem>>, vector<4x32xf32>,
    } else {
    }
    %c0 = arith.constant 0 : index
    %c0_1 = arith.constant 0 : index
    %3 = vector.load %arg13[%c0, %c0_1] : memref<4x32xf32, #tpu.memory_space<vmem>>, vector<4x32xf32>
    %c0_2 = arith.constant 0 : index
    %c0_3 = arith.constant 0 : index
    %4 = vector.load %arg1[%c0_2, %c0_3] : memref<4x256xf32, #tpu.memory_space<vmem>>, vector<4x256xf32>
    %c0_4 = arith.constant 0 : index
    %c0_5 = arith.constant 0 : index
    %5 = vector.load %arg2[%c0_4, %c0_5] : memref<256x32xf32, #tpu.memory_space<vmem>>, vector<256x32xf32>
    %cst = arith.constant dense<0.000000e+00> : vector<4x32xf32>
    %6 = tpu.matmul %4, %5, %cst {dimension_numbers = #tpu.dot_dimension_numbers<[1], [0], [0], [1], [0, 0, 1, 1], [], []>} : vector<4x256xf32>, vector<256x32xf32>, vector<4x32xf32> -> vector<4x32xf32>
    %7 = arith.addf %3, %6 : vector<4x32xf32>
    %c0_6 = arith.constant 0 : index
    %c0_7 = arith.constant 0 : index
    %8 = vector.load %arg13[%c0_6, %c0_7] : memref<4x32xf32, #tpu.memory_space<vmem>>, vector<4x32xf32>
    tpu.vector_store %arg13[%c0_6, %c0_7], %7 {strides = array<i32>} : memref<4x32xf32, #tpu.memory_space<vmem>>, vector<4x32xf32>,
    %c0_i32_8 = arith.constant 0 : i32
    %9 = arith.cmpi eq, %arg0, %c0_i32_8 : i32
    %10 = arith.extui %9 : i1 to i32
    %c0_i32_9 = arith.constant 0 : i32
    %11 = arith.cmpi ne, %10, %c0_i32_9 : i32
    scf.if %11 {
      %c0_10 = arith.constant 0 : index
      %c0_11 = arith.constant 0 : index
      %12 = vector.load %arg13[%c0_10, %c0_11] : memref<4x32xf32, #tpu.memory_space<vmem>>, vector<4x32xf32>
      %c0_12 = arith.constant 0 : index
      %c0_13 = arith.constant 0 : index
      %13 = vector.load %arg3[%c0_12, %c0_13] : memref<1x32xf32, #tpu.memory_space<vmem>>, vector<1x32xf32>
      %14 = vector.broadcast %13 : vector<1x32xf32> to vector<4x32xf32>
      %15 = arith.addf %12, %14 : vector<4x32xf32>
      %16 = vector.extract_strided_slice %15 {offsets = [0, 0], sizes = [4, 16], strides = [1, 1]} : vector<4x32xf32> to vector<4x16xf32>
      %17 = vector.extract_strided_slice %15 {offsets = [0, 16], sizes = [4, 16], strides = [1, 1]} : vector<4x32xf32> to vector<4x16xf32>
      %cst_14 = arith.constant 5.000000e-01 : f32
      %18 = vector.broadcast %cst_14 : f32 to vector<4x16xf32>
      %19 = arith.mulf %18, %17 : vector<4x16xf32>
      %20 = math.exp %19 : vector<4x16xf32>
      %c0_15 = arith.constant 0 : index
      %c0_16 = arith.constant 0 : index
      %21 = vector.load %arg4[%c0_15, %c0_16] : memref<4x16xf32, #tpu.memory_space<vmem>>, vector<4x16xf32>
      %22 = arith.mulf %20, %21 : vector<4x16xf32>
      %23 = arith.addf %16, %22 : vector<4x16xf32>
      %c0_17 = arith.constant 0 : index
      %c0_18 = arith.constant 0 : index
      %24 = vector.load %arg7[%c0_17, %c0_18] : memref<4x16xf32, #tpu.memory_space<vmem>>, vector<4x16xf32>
      tpu.vector_store %arg7[%c0_17, %c0_18], %23 {strides = array<i32>} : memref<4x16xf32, #tpu.memory_space<vmem>>, vector<4x16xf32>,
      %c0_19 = arith.constant 0 : index
      %c0_20 = arith.constant 0 : index
      %25 = vector.load %arg8[%c0_19, %c0_20] : memref<4x16xf32, #tpu.memory_space<vmem>>, vector<4x16xf32>
      tpu.vector_store %arg8[%c0_19, %c0_20], %16 {strides = array<i32>} : memref<4x16xf32, #tpu.memory_space<vmem>>, vector<4x16xf32>,
      %c0_21 = arith.constant 0 : index
      %c0_22 = arith.constant 0 : index
      %26 = vector.load %arg9[%c0_21, %c0_22] : memref<4x16xf32, #tpu.memory_space<vmem>>, vector<4x16xf32>
      tpu.vector_store %arg9[%c0_21, %c0_22], %17 {strides = array<i32>} : memref<4x16xf32, #tpu.memory_space<vmem>>, vector<4x16xf32>,
      %cst_23 = arith.constant 0.000000e+00 : f32
      %27 = vector.broadcast %cst_23 : f32 to vector<4x16xf32>
      %28 = arith.subf %27, %17 : vector<4x16xf32>
      %29 = math.exp %28 : vector<4x16xf32>
      %cst_24 = arith.constant 1.83787704 : f32
      %30 = vector.broadcast %cst_24 : f32 to vector<4x16xf32>
      %31 = arith.addf %30, %17 : vector<4x16xf32>
      %cst_25 = arith.constant -5.000000e-01 : f32
      %32 = vector.broadcast %cst_25 : f32 to vector<4x16xf32>
      %33 = arith.mulf %32, %31 : vector<4x16xf32>
      %34 = arith.subf %23, %16 : vector<4x16xf32>
      %35 = arith.mulf %34, %34 : vector<4x16xf32>
      %cst_26 = arith.constant 5.000000e-01 : f32
      %36 = vector.broadcast %cst_26 : f32 to vector<4x16xf32>
      %37 = arith.mulf %36, %35 : vector<4x16xf32>
      %38 = arith.mulf %37, %29 : vector<4x16xf32>
      %39 = arith.subf %33, %38 : vector<4x16xf32>
      %cst_27 = arith.constant dense<0.000000e+00> : vector<4xf32>
      %40 = vector.multi_reduction <add>, %39, %cst_27 [1] : vector<4x16xf32> to vector<4xf32>
      %41 = vector.shape_cast %40 : vector<4xf32> to vector<4x1xf32>
      %cst_28 = arith.constant 5.000000e-01 : f32
      %42 = vector.broadcast %cst_28 : f32 to vector<4x16xf32>
      %43 = arith.mulf %42, %23 : vector<4x16xf32>
      %44 = arith.mulf %43, %23 : vector<4x16xf32>
      %cst_29 = arith.constant -0.918938517 : f32
      %45 = vector.broadcast %cst_29 : f32 to vector<4x16xf32>
      %46 = arith.subf %45, %44 : vector<4x16xf32>
      %cst_30 = arith.constant dense<0.000000e+00> : vector<4xf32>
      %47 = vector.multi_reduction <add>, %46, %cst_30 [1] : vector<4x16xf32> to vector<4xf32>
      %48 = vector.shape_cast %47 : vector<4xf32> to vector<4x1xf32>
      %49 = tpu.iota {dimensions = array<i32: 0>} : vector<4x4xi32>
      %50 = tpu.iota {dimensions = array<i32: 1>} : vector<4x4xi32>
      %cst_31 = arith.constant -1.09861231 : f32
      %51 = vector.broadcast %cst_31 : f32 to vector<4x4xf32>
      %c0_i32_32 = arith.constant 0 : i32
      %52 = vector.broadcast %c0_i32_32 : i32 to vector<4x4xi32>
      %53 = arith.cmpi eq, %50, %52 : vector<4x4xi32>
      %c2_i32 = arith.constant 2 : i32
      %54 = vector.broadcast %c2_i32 : i32 to vector<4x4xi32>
      %55 = arith.cmpi eq, %49, %54 : vector<4x4xi32>
      %cst_33 = arith.constant -1.10161674 : f32
      %cst_34 = arith.constant -6.90775537 : f32
      %56 = vector.broadcast %cst_33 : f32 to vector<4x4xf32>
      %57 = vector.broadcast %cst_34 : f32 to vector<4x4xf32>
      %58 = arith.select %55, %56, %57 : vector<4x4xi1>, vector<4x4xf32>
      %59 = arith.select %53, %58, %51 : vector<4x4xi1>, vector<4x4xf32>
      %c1_i32 = arith.constant 1 : i32
      %60 = vector.broadcast %c1_i32 : i32 to vector<4x4xi32>
      %61 = arith.cmpi eq, %50, %60 : vector<4x4xi32>
      %cst_35 = arith.constant -1.10161674 : f32
      %62 = vector.broadcast %cst_35 : f32 to vector<4x4xf32>
      %63 = arith.select %61, %62, %59 : vector<4x4xi1>, vector<4x4xf32>
      %64 = tpu.transpose %16, [1, 0] : vector<4x16xf32> -> vector<16x4xf32>
      %65 = tpu.transpose %17, [1, 0] : vector<4x16xf32> -> vector<16x4xf32>
      %66 = tpu.transpose %29, [1, 0] : vector<4x16xf32> -> vector<16x4xf32>
      %cst_36 = arith.constant 0.000000e+00 : f32
      %67 = vector.broadcast %cst_36 : f32 to vector<4x4xf32>
      %cst_37 = arith.constant 0.000000e+00 : f32
      %68 = vector.broadcast %cst_37 : f32 to vector<4x1xf32>
      %69 = vector.extract_strided_slice %65 {offsets = [0, 0], sizes = [1, 4], strides = [1, 1]} : vector<16x4xf32> to vector<1x4xf32>
      %cst_38 = arith.constant 1.83787704 : f32
      %70 = vector.broadcast %cst_38 : f32 to vector<1x4xf32>
      %71 = arith.addf %70, %69 : vector<1x4xf32>
      %cst_39 = arith.constant -5.000000e-01 : f32
      %72 = vector.broadcast %cst_39 : f32 to vector<1x4xf32>
      %73 = arith.mulf %72, %71 : vector<1x4xf32>
      %74 = vector.extract_strided_slice %23 {offsets = [0, 0], sizes = [4, 1], strides = [1, 1]} : vector<4x16xf32> to vector<4x1xf32>
      %75 = vector.extract_strided_slice %64 {offsets = [0, 0], sizes = [1, 4], strides = [1, 1]} : vector<16x4xf32> to vector<1x4xf32>
      %76 = vector.broadcast %74 : vector<4x1xf32> to vector<4x4xf32>
      %77 = vector.broadcast %75 : vector<1x4xf32> to vector<4x4xf32>
      %78 = arith.subf %76, %77 : vector<4x4xf32>
      %79 = arith.mulf %78, %78 : vector<4x4xf32>
      %cst_40 = arith.constant 5.000000e-01 : f32
      %80 = vector.broadcast %cst_40 : f32 to vector<4x4xf32>
      %81 = arith.mulf %80, %79 : vector<4x4xf32>
      %82 = vector.extract_strided_slice %66 {offsets = [0, 0], sizes = [1, 4], strides = [1, 1]} : vector<16x4xf32> to vector<1x4xf32>
      %83 = vector.broadcast %82 : vector<1x4xf32> to vector<4x4xf32>
      %84 = arith.mulf %81, %83 : vector<4x4xf32>
      %85 = vector.broadcast %73 : vector<1x4xf32> to vector<4x4xf32>
      %86 = arith.subf %85, %84 : vector<4x4xf32>
      %87 = arith.addf %67, %86 : vector<4x4xf32>
      %88 = arith.addf %86, %63 : vector<4x4xf32>
      %cst_41 = arith.constant dense<0xFF800000> : vector<4xf32>
      %89 = vector.multi_reduction <maximumf>, %88, %cst_41 [1] : vector<4x4xf32> to vector<4xf32>
      %90 = vector.shape_cast %89 : vector<4xf32> to vector<4x1xf32>
      %91 = arith.addf %68, %90 : vector<4x1xf32>
      %92 = vector.broadcast %90 : vector<4x1xf32> to vector<4x4xf32>
      %93 = arith.subf %88, %92 : vector<4x4xf32>
      %94 = math.exp %93 : vector<4x4xf32>
      %cst_42 = arith.constant dense<0.000000e+00> : vector<4xf32>
      %95 = vector.multi_reduction <add>, %94, %cst_42 [1] : vector<4x4xf32> to vector<4xf32>
      %96 = vector.shape_cast %95 : vector<4xf32> to vector<4x1xf32>
      %97 = math.log %96 : vector<4x1xf32>
      %98 = arith.addf %91, %97 : vector<4x1xf32>
      %99 = vector.extract_strided_slice %65 {offsets = [1, 0], sizes = [1, 4], strides = [1, 1]} : vector<16x4xf32> to vector<1x4xf32>
      %cst_43 = arith.constant 1.83787704 : f32
      %100 = vector.broadcast %cst_43 : f32 to vector<1x4xf32>
      %101 = arith.addf %100, %99 : vector<1x4xf32>
      %cst_44 = arith.constant -5.000000e-01 : f32
      %102 = vector.broadcast %cst_44 : f32 to vector<1x4xf32>
      %103 = arith.mulf %102, %101 : vector<1x4xf32>
      %104 = vector.extract_strided_slice %23 {offsets = [0, 1], sizes = [4, 1], strides = [1, 1]} : vector<4x16xf32> to vector<4x1xf32>
      %105 = vector.extract_strided_slice %64 {offsets = [1, 0], sizes = [1, 4], strides = [1, 1]} : vector<16x4xf32> to vector<1x4xf32>
      %106 = vector.broadcast %104 : vector<4x1xf32> to vector<4x4xf32>
      %107 = vector.broadcast %105 : vector<1x4xf32> to vector<4x4xf32>
      %108 = arith.subf %106, %107 : vector<4x4xf32>
      %109 = arith.mulf %108, %108 : vector<4x4xf32>
      %cst_45 = arith.constant 5.000000e-01 : f32
      %110 = vector.broadcast %cst_45 : f32 to vector<4x4xf32>
      %111 = arith.mulf %110, %109 : vector<4x4xf32>
      %112 = vector.extract_strided_slice %66 {offsets = [1, 0], sizes = [1, 4], strides = [1, 1]} : vector<16x4xf32> to vector<1x4xf32>
      %113 = vector.broadcast %112 : vector<1x4xf32> to vector<4x4xf32>
      %114 = arith.mulf %111, %113 : vector<4x4xf32>
      %115 = vector.broadcast %103 : vector<1x4xf32> to vector<4x4xf32>
      %116 = arith.subf %115, %114 : vector<4x4xf32>
      %117 = arith.addf %87, %116 : vector<4x4xf32>
      %118 = arith.addf %116, %63 : vector<4x4xf32>
      %cst_46 = arith.constant dense<0xFF800000> : vector<4xf32>
      %119 = vector.multi_reduction <maximumf>, %118, %cst_46 [1] : vector<4x4xf32> to vector<4xf32>
      %120 = vector.shape_cast %119 : vector<4xf32> to vector<4x1xf32>
      %121 = arith.addf %98, %120 : vector<4x1xf32>
      %122 = vector.broadcast %120 : vector<4x1xf32> to vector<4x4xf32>
      %123 = arith.subf %118, %122 : vector<4x4xf32>
      %124 = math.exp %123 : vector<4x4xf32>
      %cst_47 = arith.constant dense<0.000000e+00> : vector<4xf32>
      %125 = vector.multi_reduction <add>, %124, %cst_47 [1] : vector<4x4xf32> to vector<4xf32>
      %126 = vector.shape_cast %125 : vector<4xf32> to vector<4x1xf32>
      %127 = math.log %126 : vector<4x1xf32>
      %128 = arith.addf %121, %127 : vector<4x1xf32>
      %129 = vector.extract_strided_slice %65 {offsets = [2, 0], sizes = [1, 4], strides = [1, 1]} : vector<16x4xf32> to vector<1x4xf32>
      %cst_48 = arith.constant 1.83787704 : f32
      %130 = vector.broadcast %cst_48 : f32 to vector<1x4xf32>
      %131 = arith.addf %130, %129 : vector<1x4xf32>
      %cst_49 = arith.constant -5.000000e-01 : f32
      %132 = vector.broadcast %cst_49 : f32 to vector<1x4xf32>
      %133 = arith.mulf %132, %131 : vector<1x4xf32>
      %134 = vector.extract_strided_slice %23 {offsets = [0, 2], sizes = [4, 1], strides = [1, 1]} : vector<4x16xf32> to vector<4x1xf32>
      %135 = vector.extract_strided_slice %64 {offsets = [2, 0], sizes = [1, 4], strides = [1, 1]} : vector<16x4xf32> to vector<1x4xf32>
      %136 = vector.broadcast %134 : vector<4x1xf32> to vector<4x4xf32>
      %137 = vector.broadcast %135 : vector<1x4xf32> to vector<4x4xf32>
      %138 = arith.subf %136, %137 : vector<4x4xf32>
      %139 = arith.mulf %138, %138 : vector<4x4xf32>
      %cst_50 = arith.constant 5.000000e-01 : f32
      %140 = vector.broadcast %cst_50 : f32 to vector<4x4xf32>
      %141 = arith.mulf %140, %139 : vector<4x4xf32>
      %142 = vector.extract_strided_slice %66 {offsets = [2, 0], sizes = [1, 4], strides = [1, 1]} : vector<16x4xf32> to vector<1x4xf32>
      %143 = vector.broadcast %142 : vector<1x4xf32> to vector<4x4xf32>
      %144 = arith.mulf %141, %143 : vector<4x4xf32>
      %145 = vector.broadcast %133 : vector<1x4xf32> to vector<4x4xf32>
      %146 = arith.subf %145, %144 : vector<4x4xf32>
      %147 = arith.addf %117, %146 : vector<4x4xf32>
      %148 = arith.addf %146, %63 : vector<4x4xf32>
      %cst_51 = arith.constant dense<0xFF800000> : vector<4xf32>
      %149 = vector.multi_reduction <maximumf>, %148, %cst_51 [1] : vector<4x4xf32> to vector<4xf32>
      %150 = vector.shape_cast %149 : vector<4xf32> to vector<4x1xf32>
      %151 = arith.addf %128, %150 : vector<4x1xf32>
      %152 = vector.broadcast %150 : vector<4x1xf32> to vector<4x4xf32>
      %153 = arith.subf %148, %152 : vector<4x4xf32>
      %154 = math.exp %153 : vector<4x4xf32>
      %cst_52 = arith.constant dense<0.000000e+00> : vector<4xf32>
      %155 = vector.multi_reduction <add>, %154, %cst_52 [1] : vector<4x4xf32> to vector<4xf32>
      %156 = vector.shape_cast %155 : vector<4xf32> to vector<4x1xf32>
      %157 = math.log %156 : vector<4x1xf32>
      %158 = arith.addf %151, %157 : vector<4x1xf32>
      %159 = vector.extract_strided_slice %65 {offsets = [3, 0], sizes = [1, 4], strides = [1, 1]} : vector<16x4xf32> to vector<1x4xf32>
      %cst_53 = arith.constant 1.83787704 : f32
      %160 = vector.broadcast %cst_53 : f32 to vector<1x4xf32>
      %161 = arith.addf %160, %159 : vector<1x4xf32>
      %cst_54 = arith.constant -5.000000e-01 : f32
      %162 = vector.broadcast %cst_54 : f32 to vector<1x4xf32>
      %163 = arith.mulf %162, %161 : vector<1x4xf32>
      %164 = vector.extract_strided_slice %23 {offsets = [0, 3], sizes = [4, 1], strides = [1, 1]} : vector<4x16xf32> to vector<4x1xf32>
      %165 = vector.extract_strided_slice %64 {offsets = [3, 0], sizes = [1, 4], strides = [1, 1]} : vector<16x4xf32> to vector<1x4xf32>
      %166 = vector.broadcast %164 : vector<4x1xf32> to vector<4x4xf32>
      %167 = vector.broadcast %165 : vector<1x4xf32> to vector<4x4xf32>
      %168 = arith.subf %166, %167 : vector<4x4xf32>
      %169 = arith.mulf %168, %168 : vector<4x4xf32>
      %cst_55 = arith.constant 5.000000e-01 : f32
      %170 = vector.broadcast %cst_55 : f32 to vector<4x4xf32>
      %171 = arith.mulf %170, %169 : vector<4x4xf32>
      %172 = vector.extract_strided_slice %66 {offsets = [3, 0], sizes = [1, 4], strides = [1, 1]} : vector<16x4xf32> to vector<1x4xf32>
      %173 = vector.broadcast %172 : vector<1x4xf32> to vector<4x4xf32>
      %174 = arith.mulf %171, %173 : vector<4x4xf32>
      %175 = vector.broadcast %163 : vector<1x4xf32> to vector<4x4xf32>
      %176 = arith.subf %175, %174 : vector<4x4xf32>
      %177 = arith.addf %147, %176 : vector<4x4xf32>
      %178 = arith.addf %176, %63 : vector<4x4xf32>
      %cst_56 = arith.constant dense<0xFF800000> : vector<4xf32>
      %179 = vector.multi_reduction <maximumf>, %178, %cst_56 [1] : vector<4x4xf32> to vector<4xf32>
      %180 = vector.shape_cast %179 : vector<4xf32> to vector<4x1xf32>
      %181 = arith.addf %158, %180 : vector<4x1xf32>
      %182 = vector.broadcast %180 : vector<4x1xf32> to vector<4x4xf32>
      %183 = arith.subf %178, %182 : vector<4x4xf32>
      %184 = math.exp %183 : vector<4x4xf32>
      %cst_57 = arith.constant dense<0.000000e+00> : vector<4xf32>
      %185 = vector.multi_reduction <add>, %184, %cst_57 [1] : vector<4x4xf32> to vector<4xf32>
      %186 = vector.shape_cast %185 : vector<4xf32> to vector<4x1xf32>
      %187 = math.log %186 : vector<4x1xf32>
      %188 = arith.addf %181, %187 : vector<4x1xf32>
      %189 = vector.extract_strided_slice %65 {offsets = [4, 0], sizes = [1, 4], strides = [1, 1]} : vector<16x4xf32> to vector<1x4xf32>
      %cst_58 = arith.constant 1.83787704 : f32
      %190 = vector.broadcast %cst_58 : f32 to vector<1x4xf32>
      %191 = arith.addf %190, %189 : vector<1x4xf32>
      %cst_59 = arith.constant -5.000000e-01 : f32
      %192 = vector.broadcast %cst_59 : f32 to vector<1x4xf32>
      %193 = arith.mulf %192, %191 : vector<1x4xf32>
      %194 = vector.extract_strided_slice %23 {offsets = [0, 4], sizes = [4, 1], strides = [1, 1]} : vector<4x16xf32> to vector<4x1xf32>
      %195 = vector.extract_strided_slice %64 {offsets = [4, 0], sizes = [1, 4], strides = [1, 1]} : vector<16x4xf32> to vector<1x4xf32>
      %196 = vector.broadcast %194 : vector<4x1xf32> to vector<4x4xf32>
      %197 = vector.broadcast %195 : vector<1x4xf32> to vector<4x4xf32>
      %198 = arith.subf %196, %197 : vector<4x4xf32>
      %199 = arith.mulf %198, %198 : vector<4x4xf32>
      %cst_60 = arith.constant 5.000000e-01 : f32
      %200 = vector.broadcast %cst_60 : f32 to vector<4x4xf32>
      %201 = arith.mulf %200, %199 : vector<4x4xf32>
      %202 = vector.extract_strided_slice %66 {offsets = [4, 0], sizes = [1, 4], strides = [1, 1]} : vector<16x4xf32> to vector<1x4xf32>
      %203 = vector.broadcast %202 : vector<1x4xf32> to vector<4x4xf32>
      %204 = arith.mulf %201, %203 : vector<4x4xf32>
      %205 = vector.broadcast %193 : vector<1x4xf32> to vector<4x4xf32>
      %206 = arith.subf %205, %204 : vector<4x4xf32>
      %207 = arith.addf %177, %206 : vector<4x4xf32>
      %208 = arith.addf %206, %63 : vector<4x4xf32>
      %cst_61 = arith.constant dense<0xFF800000> : vector<4xf32>
      %209 = vector.multi_reduction <maximumf>, %208, %cst_61 [1] : vector<4x4xf32> to vector<4xf32>
      %210 = vector.shape_cast %209 : vector<4xf32> to vector<4x1xf32>
      %211 = arith.addf %188, %210 : vector<4x1xf32>
      %212 = vector.broadcast %210 : vector<4x1xf32> to vector<4x4xf32>
      %213 = arith.subf %208, %212 : vector<4x4xf32>
      %214 = math.exp %213 : vector<4x4xf32>
      %cst_62 = arith.constant dense<0.000000e+00> : vector<4xf32>
      %215 = vector.multi_reduction <add>, %214, %cst_62 [1] : vector<4x4xf32> to vector<4xf32>
      %216 = vector.shape_cast %215 : vector<4xf32> to vector<4x1xf32>
      %217 = math.log %216 : vector<4x1xf32>
      %218 = arith.addf %211, %217 : vector<4x1xf32>
      %219 = vector.extract_strided_slice %65 {offsets = [5, 0], sizes = [1, 4], strides = [1, 1]} : vector<16x4xf32> to vector<1x4xf32>
      %cst_63 = arith.constant 1.83787704 : f32
      %220 = vector.broadcast %cst_63 : f32 to vector<1x4xf32>
      %221 = arith.addf %220, %219 : vector<1x4xf32>
      %cst_64 = arith.constant -5.000000e-01 : f32
      %222 = vector.broadcast %cst_64 : f32 to vector<1x4xf32>
      %223 = arith.mulf %222, %221 : vector<1x4xf32>
      %224 = vector.extract_strided_slice %23 {offsets = [0, 5], sizes = [4, 1], strides = [1, 1]} : vector<4x16xf32> to vector<4x1xf32>
      %225 = vector.extract_strided_slice %64 {offsets = [5, 0], sizes = [1, 4], strides = [1, 1]} : vector<16x4xf32> to vector<1x4xf32>
      %226 = vector.broadcast %224 : vector<4x1xf32> to vector<4x4xf32>
      %227 = vector.broadcast %225 : vector<1x4xf32> to vector<4x4xf32>
      %228 = arith.subf %226, %227 : vector<4x4xf32>
      %229 = arith.mulf %228, %228 : vector<4x4xf32>
      %cst_65 = arith.constant 5.000000e-01 : f32
      %230 = vector.broadcast %cst_65 : f32 to vector<4x4xf32>
      %231 = arith.mulf %230, %229 : vector<4x4xf32>
      %232 = vector.extract_strided_slice %66 {offsets = [5, 0], sizes = [1, 4], strides = [1, 1]} : vector<16x4xf32> to vector<1x4xf32>
      %233 = vector.broadcast %232 : vector<1x4xf32> to vector<4x4xf32>
      %234 = arith.mulf %231, %233 : vector<4x4xf32>
      %235 = vector.broadcast %223 : vector<1x4xf32> to vector<4x4xf32>
      %236 = arith.subf %235, %234 : vector<4x4xf32>
      %237 = arith.addf %207, %236 : vector<4x4xf32>
      %238 = arith.addf %236, %63 : vector<4x4xf32>
      %cst_66 = arith.constant dense<0xFF800000> : vector<4xf32>
      %239 = vector.multi_reduction <maximumf>, %238, %cst_66 [1] : vector<4x4xf32> to vector<4xf32>
      %240 = vector.shape_cast %239 : vector<4xf32> to vector<4x1xf32>
      %241 = arith.addf %218, %240 : vector<4x1xf32>
      %242 = vector.broadcast %240 : vector<4x1xf32> to vector<4x4xf32>
      %243 = arith.subf %238, %242 : vector<4x4xf32>
      %244 = math.exp %243 : vector<4x4xf32>
      %cst_67 = arith.constant dense<0.000000e+00> : vector<4xf32>
      %245 = vector.multi_reduction <add>, %244, %cst_67 [1] : vector<4x4xf32> to vector<4xf32>
      %246 = vector.shape_cast %245 : vector<4xf32> to vector<4x1xf32>
      %247 = math.log %246 : vector<4x1xf32>
      %248 = arith.addf %241, %247 : vector<4x1xf32>
      %249 = vector.extract_strided_slice %65 {offsets = [6, 0], sizes = [1, 4], strides = [1, 1]} : vector<16x4xf32> to vector<1x4xf32>
      %cst_68 = arith.constant 1.83787704 : f32
      %250 = vector.broadcast %cst_68 : f32 to vector<1x4xf32>
      %251 = arith.addf %250, %249 : vector<1x4xf32>
      %cst_69 = arith.constant -5.000000e-01 : f32
      %252 = vector.broadcast %cst_69 : f32 to vector<1x4xf32>
      %253 = arith.mulf %252, %251 : vector<1x4xf32>
      %254 = vector.extract_strided_slice %23 {offsets = [0, 6], sizes = [4, 1], strides = [1, 1]} : vector<4x16xf32> to vector<4x1xf32>
      %255 = vector.extract_strided_slice %64 {offsets = [6, 0], sizes = [1, 4], strides = [1, 1]} : vector<16x4xf32> to vector<1x4xf32>
      %256 = vector.broadcast %254 : vector<4x1xf32> to vector<4x4xf32>
      %257 = vector.broadcast %255 : vector<1x4xf32> to vector<4x4xf32>
      %258 = arith.subf %256, %257 : vector<4x4xf32>
      %259 = arith.mulf %258, %258 : vector<4x4xf32>
      %cst_70 = arith.constant 5.000000e-01 : f32
      %260 = vector.broadcast %cst_70 : f32 to vector<4x4xf32>
      %261 = arith.mulf %260, %259 : vector<4x4xf32>
      %262 = vector.extract_strided_slice %66 {offsets = [6, 0], sizes = [1, 4], strides = [1, 1]} : vector<16x4xf32> to vector<1x4xf32>
      %263 = vector.broadcast %262 : vector<1x4xf32> to vector<4x4xf32>
      %264 = arith.mulf %261, %263 : vector<4x4xf32>
      %265 = vector.broadcast %253 : vector<1x4xf32> to vector<4x4xf32>
      %266 = arith.subf %265, %264 : vector<4x4xf32>
      %267 = arith.addf %237, %266 : vector<4x4xf32>
      %268 = arith.addf %266, %63 : vector<4x4xf32>
      %cst_71 = arith.constant dense<0xFF800000> : vector<4xf32>
      %269 = vector.multi_reduction <maximumf>, %268, %cst_71 [1] : vector<4x4xf32> to vector<4xf32>
      %270 = vector.shape_cast %269 : vector<4xf32> to vector<4x1xf32>
      %271 = arith.addf %248, %270 : vector<4x1xf32>
      %272 = vector.broadcast %270 : vector<4x1xf32> to vector<4x4xf32>
      %273 = arith.subf %268, %272 : vector<4x4xf32>
      %274 = math.exp %273 : vector<4x4xf32>
      %cst_72 = arith.constant dense<0.000000e+00> : vector<4xf32>
      %275 = vector.multi_reduction <add>, %274, %cst_72 [1] : vector<4x4xf32> to vector<4xf32>
      %276 = vector.shape_cast %275 : vector<4xf32> to vector<4x1xf32>
      %277 = math.log %276 : vector<4x1xf32>
      %278 = arith.addf %271, %277 : vector<4x1xf32>
      %279 = vector.extract_strided_slice %65 {offsets = [7, 0], sizes = [1, 4], strides = [1, 1]} : vector<16x4xf32> to vector<1x4xf32>
      %cst_73 = arith.constant 1.83787704 : f32
      %280 = vector.broadcast %cst_73 : f32 to vector<1x4xf32>
      %281 = arith.addf %280, %279 : vector<1x4xf32>
      %cst_74 = arith.constant -5.000000e-01 : f32
      %282 = vector.broadcast %cst_74 : f32 to vector<1x4xf32>
      %283 = arith.mulf %282, %281 : vector<1x4xf32>
      %284 = vector.extract_strided_slice %23 {offsets = [0, 7], sizes = [4, 1], strides = [1, 1]} : vector<4x16xf32> to vector<4x1xf32>
      %285 = vector.extract_strided_slice %64 {offsets = [7, 0], sizes = [1, 4], strides = [1, 1]} : vector<16x4xf32> to vector<1x4xf32>
      %286 = vector.broadcast %284 : vector<4x1xf32> to vector<4x4xf32>
      %287 = vector.broadcast %285 : vector<1x4xf32> to vector<4x4xf32>
      %288 = arith.subf %286, %287 : vector<4x4xf32>
      %289 = arith.mulf %288, %288 : vector<4x4xf32>
      %cst_75 = arith.constant 5.000000e-01 : f32
      %290 = vector.broadcast %cst_75 : f32 to vector<4x4xf32>
      %291 = arith.mulf %290, %289 : vector<4x4xf32>
      %292 = vector.extract_strided_slice %66 {offsets = [7, 0], sizes = [1, 4], strides = [1, 1]} : vector<16x4xf32> to vector<1x4xf32>
      %293 = vector.broadcast %292 : vector<1x4xf32> to vector<4x4xf32>
      %294 = arith.mulf %291, %293 : vector<4x4xf32>
      %295 = vector.broadcast %283 : vector<1x4xf32> to vector<4x4xf32>
      %296 = arith.subf %295, %294 : vector<4x4xf32>
      %297 = arith.addf %267, %296 : vector<4x4xf32>
      %298 = arith.addf %296, %63 : vector<4x4xf32>
      %cst_76 = arith.constant dense<0xFF800000> : vector<4xf32>
      %299 = vector.multi_reduction <maximumf>, %298, %cst_76 [1] : vector<4x4xf32> to vector<4xf32>
      %300 = vector.shape_cast %299 : vector<4xf32> to vector<4x1xf32>
      %301 = arith.addf %278, %300 : vector<4x1xf32>
      %302 = vector.broadcast %300 : vector<4x1xf32> to vector<4x4xf32>
      %303 = arith.subf %298, %302 : vector<4x4xf32>
      %304 = math.exp %303 : vector<4x4xf32>
      %cst_77 = arith.constant dense<0.000000e+00> : vector<4xf32>
      %305 = vector.multi_reduction <add>, %304, %cst_77 [1] : vector<4x4xf32> to vector<4xf32>
      %306 = vector.shape_cast %305 : vector<4xf32> to vector<4x1xf32>
      %307 = math.log %306 : vector<4x1xf32>
      %308 = arith.addf %301, %307 : vector<4x1xf32>
      %309 = vector.extract_strided_slice %65 {offsets = [8, 0], sizes = [1, 4], strides = [1, 1]} : vector<16x4xf32> to vector<1x4xf32>
      %cst_78 = arith.constant 1.83787704 : f32
      %310 = vector.broadcast %cst_78 : f32 to vector<1x4xf32>
      %311 = arith.addf %310, %309 : vector<1x4xf32>
      %cst_79 = arith.constant -5.000000e-01 : f32
      %312 = vector.broadcast %cst_79 : f32 to vector<1x4xf32>
      %313 = arith.mulf %312, %311 : vector<1x4xf32>
      %314 = vector.extract_strided_slice %23 {offsets = [0, 8], sizes = [4, 1], strides = [1, 1]} : vector<4x16xf32> to vector<4x1xf32>
      %315 = vector.extract_strided_slice %64 {offsets = [8, 0], sizes = [1, 4], strides = [1, 1]} : vector<16x4xf32> to vector<1x4xf32>
      %316 = vector.broadcast %314 : vector<4x1xf32> to vector<4x4xf32>
      %317 = vector.broadcast %315 : vector<1x4xf32> to vector<4x4xf32>
      %318 = arith.subf %316, %317 : vector<4x4xf32>
      %319 = arith.mulf %318, %318 : vector<4x4xf32>
      %cst_80 = arith.constant 5.000000e-01 : f32
      %320 = vector.broadcast %cst_80 : f32 to vector<4x4xf32>
      %321 = arith.mulf %320, %319 : vector<4x4xf32>
      %322 = vector.extract_strided_slice %66 {offsets = [8, 0], sizes = [1, 4], strides = [1, 1]} : vector<16x4xf32> to vector<1x4xf32>
      %323 = vector.broadcast %322 : vector<1x4xf32> to vector<4x4xf32>
      %324 = arith.mulf %321, %323 : vector<4x4xf32>
      %325 = vector.broadcast %313 : vector<1x4xf32> to vector<4x4xf32>
      %326 = arith.subf %325, %324 : vector<4x4xf32>
      %327 = arith.addf %297, %326 : vector<4x4xf32>
      %328 = arith.addf %326, %63 : vector<4x4xf32>
      %cst_81 = arith.constant dense<0xFF800000> : vector<4xf32>
      %329 = vector.multi_reduction <maximumf>, %328, %cst_81 [1] : vector<4x4xf32> to vector<4xf32>
      %330 = vector.shape_cast %329 : vector<4xf32> to vector<4x1xf32>
      %331 = arith.addf %308, %330 : vector<4x1xf32>
      %332 = vector.broadcast %330 : vector<4x1xf32> to vector<4x4xf32>
      %333 = arith.subf %328, %332 : vector<4x4xf32>
      %334 = math.exp %333 : vector<4x4xf32>
      %cst_82 = arith.constant dense<0.000000e+00> : vector<4xf32>
      %335 = vector.multi_reduction <add>, %334, %cst_82 [1] : vector<4x4xf32> to vector<4xf32>
      %336 = vector.shape_cast %335 : vector<4xf32> to vector<4x1xf32>
      %337 = math.log %336 : vector<4x1xf32>
      %338 = arith.addf %331, %337 : vector<4x1xf32>
      %339 = vector.extract_strided_slice %65 {offsets = [9, 0], sizes = [1, 4], strides = [1, 1]} : vector<16x4xf32> to vector<1x4xf32>
      %cst_83 = arith.constant 1.83787704 : f32
      %340 = vector.broadcast %cst_83 : f32 to vector<1x4xf32>
      %341 = arith.addf %340, %339 : vector<1x4xf32>
      %cst_84 = arith.constant -5.000000e-01 : f32
      %342 = vector.broadcast %cst_84 : f32 to vector<1x4xf32>
      %343 = arith.mulf %342, %341 : vector<1x4xf32>
      %344 = vector.extract_strided_slice %23 {offsets = [0, 9], sizes = [4, 1], strides = [1, 1]} : vector<4x16xf32> to vector<4x1xf32>
      %345 = vector.extract_strided_slice %64 {offsets = [9, 0], sizes = [1, 4], strides = [1, 1]} : vector<16x4xf32> to vector<1x4xf32>
      %346 = vector.broadcast %344 : vector<4x1xf32> to vector<4x4xf32>
      %347 = vector.broadcast %345 : vector<1x4xf32> to vector<4x4xf32>
      %348 = arith.subf %346, %347 : vector<4x4xf32>
      %349 = arith.mulf %348, %348 : vector<4x4xf32>
      %cst_85 = arith.constant 5.000000e-01 : f32
      %350 = vector.broadcast %cst_85 : f32 to vector<4x4xf32>
      %351 = arith.mulf %350, %349 : vector<4x4xf32>
      %352 = vector.extract_strided_slice %66 {offsets = [9, 0], sizes = [1, 4], strides = [1, 1]} : vector<16x4xf32> to vector<1x4xf32>
      %353 = vector.broadcast %352 : vector<1x4xf32> to vector<4x4xf32>
      %354 = arith.mulf %351, %353 : vector<4x4xf32>
      %355 = vector.broadcast %343 : vector<1x4xf32> to vector<4x4xf32>
      %356 = arith.subf %355, %354 : vector<4x4xf32>
      %357 = arith.addf %327, %356 : vector<4x4xf32>
      %358 = arith.addf %356, %63 : vector<4x4xf32>
      %cst_86 = arith.constant dense<0xFF800000> : vector<4xf32>
      %359 = vector.multi_reduction <maximumf>, %358, %cst_86 [1] : vector<4x4xf32> to vector<4xf32>
      %360 = vector.shape_cast %359 : vector<4xf32> to vector<4x1xf32>
      %361 = arith.addf %338, %360 : vector<4x1xf32>
      %362 = vector.broadcast %360 : vector<4x1xf32> to vector<4x4xf32>
      %363 = arith.subf %358, %362 : vector<4x4xf32>
      %364 = math.exp %363 : vector<4x4xf32>
      %cst_87 = arith.constant dense<0.000000e+00> : vector<4xf32>
      %365 = vector.multi_reduction <add>, %364, %cst_87 [1] : vector<4x4xf32> to vector<4xf32>
      %366 = vector.shape_cast %365 : vector<4xf32> to vector<4x1xf32>
      %367 = math.log %366 : vector<4x1xf32>
      %368 = arith.addf %361, %367 : vector<4x1xf32>
      %369 = vector.extract_strided_slice %65 {offsets = [10, 0], sizes = [1, 4], strides = [1, 1]} : vector<16x4xf32> to vector<1x4xf32>
      %cst_88 = arith.constant 1.83787704 : f32
      %370 = vector.broadcast %cst_88 : f32 to vector<1x4xf32>
      %371 = arith.addf %370, %369 : vector<1x4xf32>
      %cst_89 = arith.constant -5.000000e-01 : f32
      %372 = vector.broadcast %cst_89 : f32 to vector<1x4xf32>
      %373 = arith.mulf %372, %371 : vector<1x4xf32>
      %374 = vector.extract_strided_slice %23 {offsets = [0, 10], sizes = [4, 1], strides = [1, 1]} : vector<4x16xf32> to vector<4x1xf32>
      %375 = vector.extract_strided_slice %64 {offsets = [10, 0], sizes = [1, 4], strides = [1, 1]} : vector<16x4xf32> to vector<1x4xf32>
      %376 = vector.broadcast %374 : vector<4x1xf32> to vector<4x4xf32>
      %377 = vector.broadcast %375 : vector<1x4xf32> to vector<4x4xf32>
      %378 = arith.subf %376, %377 : vector<4x4xf32>
      %379 = arith.mulf %378, %378 : vector<4x4xf32>
      %cst_90 = arith.constant 5.000000e-01 : f32
      %380 = vector.broadcast %cst_90 : f32 to vector<4x4xf32>
      %381 = arith.mulf %380, %379 : vector<4x4xf32>
      %382 = vector.extract_strided_slice %66 {offsets = [10, 0], sizes = [1, 4], strides = [1, 1]} : vector<16x4xf32> to vector<1x4xf32>
      %383 = vector.broadcast %382 : vector<1x4xf32> to vector<4x4xf32>
      %384 = arith.mulf %381, %383 : vector<4x4xf32>
      %385 = vector.broadcast %373 : vector<1x4xf32> to vector<4x4xf32>
      %386 = arith.subf %385, %384 : vector<4x4xf32>
      %387 = arith.addf %357, %386 : vector<4x4xf32>
      %388 = arith.addf %386, %63 : vector<4x4xf32>
      %cst_91 = arith.constant dense<0xFF800000> : vector<4xf32>
      %389 = vector.multi_reduction <maximumf>, %388, %cst_91 [1] : vector<4x4xf32> to vector<4xf32>
      %390 = vector.shape_cast %389 : vector<4xf32> to vector<4x1xf32>
      %391 = arith.addf %368, %390 : vector<4x1xf32>
      %392 = vector.broadcast %390 : vector<4x1xf32> to vector<4x4xf32>
      %393 = arith.subf %388, %392 : vector<4x4xf32>
      %394 = math.exp %393 : vector<4x4xf32>
      %cst_92 = arith.constant dense<0.000000e+00> : vector<4xf32>
      %395 = vector.multi_reduction <add>, %394, %cst_92 [1] : vector<4x4xf32> to vector<4xf32>
      %396 = vector.shape_cast %395 : vector<4xf32> to vector<4x1xf32>
      %397 = math.log %396 : vector<4x1xf32>
      %398 = arith.addf %391, %397 : vector<4x1xf32>
      %399 = vector.extract_strided_slice %65 {offsets = [11, 0], sizes = [1, 4], strides = [1, 1]} : vector<16x4xf32> to vector<1x4xf32>
      %cst_93 = arith.constant 1.83787704 : f32
      %400 = vector.broadcast %cst_93 : f32 to vector<1x4xf32>
      %401 = arith.addf %400, %399 : vector<1x4xf32>
      %cst_94 = arith.constant -5.000000e-01 : f32
      %402 = vector.broadcast %cst_94 : f32 to vector<1x4xf32>
      %403 = arith.mulf %402, %401 : vector<1x4xf32>
      %404 = vector.extract_strided_slice %23 {offsets = [0, 11], sizes = [4, 1], strides = [1, 1]} : vector<4x16xf32> to vector<4x1xf32>
      %405 = vector.extract_strided_slice %64 {offsets = [11, 0], sizes = [1, 4], strides = [1, 1]} : vector<16x4xf32> to vector<1x4xf32>
      %406 = vector.broadcast %404 : vector<4x1xf32> to vector<4x4xf32>
      %407 = vector.broadcast %405 : vector<1x4xf32> to vector<4x4xf32>
      %408 = arith.subf %406, %407 : vector<4x4xf32>
      %409 = arith.mulf %408, %408 : vector<4x4xf32>
      %cst_95 = arith.constant 5.000000e-01 : f32
      %410 = vector.broadcast %cst_95 : f32 to vector<4x4xf32>
      %411 = arith.mulf %410, %409 : vector<4x4xf32>
      %412 = vector.extract_strided_slice %66 {offsets = [11, 0], sizes = [1, 4], strides = [1, 1]} : vector<16x4xf32> to vector<1x4xf32>
      %413 = vector.broadcast %412 : vector<1x4xf32> to vector<4x4xf32>
      %414 = arith.mulf %411, %413 : vector<4x4xf32>
      %415 = vector.broadcast %403 : vector<1x4xf32> to vector<4x4xf32>
      %416 = arith.subf %415, %414 : vector<4x4xf32>
      %417 = arith.addf %387, %416 : vector<4x4xf32>
      %418 = arith.addf %416, %63 : vector<4x4xf32>
      %cst_96 = arith.constant dense<0xFF800000> : vector<4xf32>
      %419 = vector.multi_reduction <maximumf>, %418, %cst_96 [1] : vector<4x4xf32> to vector<4xf32>
      %420 = vector.shape_cast %419 : vector<4xf32> to vector<4x1xf32>
      %421 = arith.addf %398, %420 : vector<4x1xf32>
      %422 = vector.broadcast %420 : vector<4x1xf32> to vector<4x4xf32>
      %423 = arith.subf %418, %422 : vector<4x4xf32>
      %424 = math.exp %423 : vector<4x4xf32>
      %cst_97 = arith.constant dense<0.000000e+00> : vector<4xf32>
      %425 = vector.multi_reduction <add>, %424, %cst_97 [1] : vector<4x4xf32> to vector<4xf32>
      %426 = vector.shape_cast %425 : vector<4xf32> to vector<4x1xf32>
      %427 = math.log %426 : vector<4x1xf32>
      %428 = arith.addf %421, %427 : vector<4x1xf32>
      %429 = vector.extract_strided_slice %65 {offsets = [12, 0], sizes = [1, 4], strides = [1, 1]} : vector<16x4xf32> to vector<1x4xf32>
      %cst_98 = arith.constant 1.83787704 : f32
      %430 = vector.broadcast %cst_98 : f32 to vector<1x4xf32>
      %431 = arith.addf %430, %429 : vector<1x4xf32>
      %cst_99 = arith.constant -5.000000e-01 : f32
      %432 = vector.broadcast %cst_99 : f32 to vector<1x4xf32>
      %433 = arith.mulf %432, %431 : vector<1x4xf32>
      %434 = vector.extract_strided_slice %23 {offsets = [0, 12], sizes = [4, 1], strides = [1, 1]} : vector<4x16xf32> to vector<4x1xf32>
      %435 = vector.extract_strided_slice %64 {offsets = [12, 0], sizes = [1, 4], strides = [1, 1]} : vector<16x4xf32> to vector<1x4xf32>
      %436 = vector.broadcast %434 : vector<4x1xf32> to vector<4x4xf32>
      %437 = vector.broadcast %435 : vector<1x4xf32> to vector<4x4xf32>
      %438 = arith.subf %436, %437 : vector<4x4xf32>
      %439 = arith.mulf %438, %438 : vector<4x4xf32>
      %cst_100 = arith.constant 5.000000e-01 : f32
      %440 = vector.broadcast %cst_100 : f32 to vector<4x4xf32>
      %441 = arith.mulf %440, %439 : vector<4x4xf32>
      %442 = vector.extract_strided_slice %66 {offsets = [12, 0], sizes = [1, 4], strides = [1, 1]} : vector<16x4xf32> to vector<1x4xf32>
      %443 = vector.broadcast %442 : vector<1x4xf32> to vector<4x4xf32>
      %444 = arith.mulf %441, %443 : vector<4x4xf32>
      %445 = vector.broadcast %433 : vector<1x4xf32> to vector<4x4xf32>
      %446 = arith.subf %445, %444 : vector<4x4xf32>
      %447 = arith.addf %417, %446 : vector<4x4xf32>
      %448 = arith.addf %446, %63 : vector<4x4xf32>
      %cst_101 = arith.constant dense<0xFF800000> : vector<4xf32>
      %449 = vector.multi_reduction <maximumf>, %448, %cst_101 [1] : vector<4x4xf32> to vector<4xf32>
      %450 = vector.shape_cast %449 : vector<4xf32> to vector<4x1xf32>
      %451 = arith.addf %428, %450 : vector<4x1xf32>
      %452 = vector.broadcast %450 : vector<4x1xf32> to vector<4x4xf32>
      %453 = arith.subf %448, %452 : vector<4x4xf32>
      %454 = math.exp %453 : vector<4x4xf32>
      %cst_102 = arith.constant dense<0.000000e+00> : vector<4xf32>
      %455 = vector.multi_reduction <add>, %454, %cst_102 [1] : vector<4x4xf32> to vector<4xf32>
      %456 = vector.shape_cast %455 : vector<4xf32> to vector<4x1xf32>
      %457 = math.log %456 : vector<4x1xf32>
      %458 = arith.addf %451, %457 : vector<4x1xf32>
      %459 = vector.extract_strided_slice %65 {offsets = [13, 0], sizes = [1, 4], strides = [1, 1]} : vector<16x4xf32> to vector<1x4xf32>
      %cst_103 = arith.constant 1.83787704 : f32
      %460 = vector.broadcast %cst_103 : f32 to vector<1x4xf32>
      %461 = arith.addf %460, %459 : vector<1x4xf32>
      %cst_104 = arith.constant -5.000000e-01 : f32
      %462 = vector.broadcast %cst_104 : f32 to vector<1x4xf32>
      %463 = arith.mulf %462, %461 : vector<1x4xf32>
      %464 = vector.extract_strided_slice %23 {offsets = [0, 13], sizes = [4, 1], strides = [1, 1]} : vector<4x16xf32> to vector<4x1xf32>
      %465 = vector.extract_strided_slice %64 {offsets = [13, 0], sizes = [1, 4], strides = [1, 1]} : vector<16x4xf32> to vector<1x4xf32>
      %466 = vector.broadcast %464 : vector<4x1xf32> to vector<4x4xf32>
      %467 = vector.broadcast %465 : vector<1x4xf32> to vector<4x4xf32>
      %468 = arith.subf %466, %467 : vector<4x4xf32>
      %469 = arith.mulf %468, %468 : vector<4x4xf32>
      %cst_105 = arith.constant 5.000000e-01 : f32
      %470 = vector.broadcast %cst_105 : f32 to vector<4x4xf32>
      %471 = arith.mulf %470, %469 : vector<4x4xf32>
      %472 = vector.extract_strided_slice %66 {offsets = [13, 0], sizes = [1, 4], strides = [1, 1]} : vector<16x4xf32> to vector<1x4xf32>
      %473 = vector.broadcast %472 : vector<1x4xf32> to vector<4x4xf32>
      %474 = arith.mulf %471, %473 : vector<4x4xf32>
      %475 = vector.broadcast %463 : vector<1x4xf32> to vector<4x4xf32>
      %476 = arith.subf %475, %474 : vector<4x4xf32>
      %477 = arith.addf %447, %476 : vector<4x4xf32>
      %478 = arith.addf %476, %63 : vector<4x4xf32>
      %cst_106 = arith.constant dense<0xFF800000> : vector<4xf32>
      %479 = vector.multi_reduction <maximumf>, %478, %cst_106 [1] : vector<4x4xf32> to vector<4xf32>
      %480 = vector.shape_cast %479 : vector<4xf32> to vector<4x1xf32>
      %481 = arith.addf %458, %480 : vector<4x1xf32>
      %482 = vector.broadcast %480 : vector<4x1xf32> to vector<4x4xf32>
      %483 = arith.subf %478, %482 : vector<4x4xf32>
      %484 = math.exp %483 : vector<4x4xf32>
      %cst_107 = arith.constant dense<0.000000e+00> : vector<4xf32>
      %485 = vector.multi_reduction <add>, %484, %cst_107 [1] : vector<4x4xf32> to vector<4xf32>
      %486 = vector.shape_cast %485 : vector<4xf32> to vector<4x1xf32>
      %487 = math.log %486 : vector<4x1xf32>
      %488 = arith.addf %481, %487 : vector<4x1xf32>
      %489 = vector.extract_strided_slice %65 {offsets = [14, 0], sizes = [1, 4], strides = [1, 1]} : vector<16x4xf32> to vector<1x4xf32>
      %cst_108 = arith.constant 1.83787704 : f32
      %490 = vector.broadcast %cst_108 : f32 to vector<1x4xf32>
      %491 = arith.addf %490, %489 : vector<1x4xf32>
      %cst_109 = arith.constant -5.000000e-01 : f32
      %492 = vector.broadcast %cst_109 : f32 to vector<1x4xf32>
      %493 = arith.mulf %492, %491 : vector<1x4xf32>
      %494 = vector.extract_strided_slice %23 {offsets = [0, 14], sizes = [4, 1], strides = [1, 1]} : vector<4x16xf32> to vector<4x1xf32>
      %495 = vector.extract_strided_slice %64 {offsets = [14, 0], sizes = [1, 4], strides = [1, 1]} : vector<16x4xf32> to vector<1x4xf32>
      %496 = vector.broadcast %494 : vector<4x1xf32> to vector<4x4xf32>
      %497 = vector.broadcast %495 : vector<1x4xf32> to vector<4x4xf32>
      %498 = arith.subf %496, %497 : vector<4x4xf32>
      %499 = arith.mulf %498, %498 : vector<4x4xf32>
      %cst_110 = arith.constant 5.000000e-01 : f32
      %500 = vector.broadcast %cst_110 : f32 to vector<4x4xf32>
      %501 = arith.mulf %500, %499 : vector<4x4xf32>
      %502 = vector.extract_strided_slice %66 {offsets = [14, 0], sizes = [1, 4], strides = [1, 1]} : vector<16x4xf32> to vector<1x4xf32>
      %503 = vector.broadcast %502 : vector<1x4xf32> to vector<4x4xf32>
      %504 = arith.mulf %501, %503 : vector<4x4xf32>
      %505 = vector.broadcast %493 : vector<1x4xf32> to vector<4x4xf32>
      %506 = arith.subf %505, %504 : vector<4x4xf32>
      %507 = arith.addf %477, %506 : vector<4x4xf32>
      %508 = arith.addf %506, %63 : vector<4x4xf32>
      %cst_111 = arith.constant dense<0xFF800000> : vector<4xf32>
      %509 = vector.multi_reduction <maximumf>, %508, %cst_111 [1] : vector<4x4xf32> to vector<4xf32>
      %510 = vector.shape_cast %509 : vector<4xf32> to vector<4x1xf32>
      %511 = arith.addf %488, %510 : vector<4x1xf32>
      %512 = vector.broadcast %510 : vector<4x1xf32> to vector<4x4xf32>
      %513 = arith.subf %508, %512 : vector<4x4xf32>
      %514 = math.exp %513 : vector<4x4xf32>
      %cst_112 = arith.constant dense<0.000000e+00> : vector<4xf32>
      %515 = vector.multi_reduction <add>, %514, %cst_112 [1] : vector<4x4xf32> to vector<4xf32>
      %516 = vector.shape_cast %515 : vector<4xf32> to vector<4x1xf32>
      %517 = math.log %516 : vector<4x1xf32>
      %518 = arith.addf %511, %517 : vector<4x1xf32>
      %519 = vector.extract_strided_slice %65 {offsets = [15, 0], sizes = [1, 4], strides = [1, 1]} : vector<16x4xf32> to vector<1x4xf32>
      %cst_113 = arith.constant 1.83787704 : f32
      %520 = vector.broadcast %cst_113 : f32 to vector<1x4xf32>
      %521 = arith.addf %520, %519 : vector<1x4xf32>
      %cst_114 = arith.constant -5.000000e-01 : f32
      %522 = vector.broadcast %cst_114 : f32 to vector<1x4xf32>
      %523 = arith.mulf %522, %521 : vector<1x4xf32>
      %524 = vector.extract_strided_slice %23 {offsets = [0, 15], sizes = [4, 1], strides = [1, 1]} : vector<4x16xf32> to vector<4x1xf32>
      %525 = vector.extract_strided_slice %64 {offsets = [15, 0], sizes = [1, 4], strides = [1, 1]} : vector<16x4xf32> to vector<1x4xf32>
      %526 = vector.broadcast %524 : vector<4x1xf32> to vector<4x4xf32>
      %527 = vector.broadcast %525 : vector<1x4xf32> to vector<4x4xf32>
      %528 = arith.subf %526, %527 : vector<4x4xf32>
      %529 = arith.mulf %528, %528 : vector<4x4xf32>
      %cst_115 = arith.constant 5.000000e-01 : f32
      %530 = vector.broadcast %cst_115 : f32 to vector<4x4xf32>
      %531 = arith.mulf %530, %529 : vector<4x4xf32>
      %532 = vector.extract_strided_slice %66 {offsets = [15, 0], sizes = [1, 4], strides = [1, 1]} : vector<16x4xf32> to vector<1x4xf32>
      %533 = vector.broadcast %532 : vector<1x4xf32> to vector<4x4xf32>
      %534 = arith.mulf %531, %533 : vector<4x4xf32>
      %535 = vector.broadcast %523 : vector<1x4xf32> to vector<4x4xf32>
      %536 = arith.subf %535, %534 : vector<4x4xf32>
      %537 = arith.addf %507, %536 : vector<4x4xf32>
      %538 = arith.addf %536, %63 : vector<4x4xf32>
      %cst_116 = arith.constant dense<0xFF800000> : vector<4xf32>
      %539 = vector.multi_reduction <maximumf>, %538, %cst_116 [1] : vector<4x4xf32> to vector<4xf32>
      %540 = vector.shape_cast %539 : vector<4xf32> to vector<4x1xf32>
      %541 = arith.addf %518, %540 : vector<4x1xf32>
      %542 = vector.broadcast %540 : vector<4x1xf32> to vector<4x4xf32>
      %543 = arith.subf %538, %542 : vector<4x4xf32>
      %544 = math.exp %543 : vector<4x4xf32>
      %cst_117 = arith.constant dense<0.000000e+00> : vector<4xf32>
      %545 = vector.multi_reduction <add>, %544, %cst_117 [1] : vector<4x4xf32> to vector<4xf32>
      %546 = vector.shape_cast %545 : vector<4xf32> to vector<4x1xf32>
      %547 = math.log %546 : vector<4x1xf32>
      %548 = arith.addf %541, %547 : vector<4x1xf32>
      %549 = arith.addf %537, %63 : vector<4x4xf32>
      %cst_118 = arith.constant dense<0xFF800000> : vector<4xf32>
      %550 = vector.multi_reduction <maximumf>, %549, %cst_118 [1] : vector<4x4xf32> to vector<4xf32>
      %551 = vector.shape_cast %550 : vector<4xf32> to vector<4x1xf32>
      %552 = vector.broadcast %551 : vector<4x1xf32> to vector<4x4xf32>
      %553 = arith.subf %549, %552 : vector<4x4xf32>
      %554 = math.exp %553 : vector<4x4xf32>
      %cst_119 = arith.constant dense<0.000000e+00> : vector<4xf32>
      %555 = vector.multi_reduction <add>, %554, %cst_119 [1] : vector<4x4xf32> to vector<4xf32>
      %556 = vector.shape_cast %555 : vector<4xf32> to vector<4x1xf32>
      %557 = math.log %556 : vector<4x1xf32>
      %558 = arith.addf %557, %551 : vector<4x1xf32>
      %559 = arith.subf %41, %558 : vector<4x1xf32>
      %560 = vector.shape_cast %559 : vector<4x1xf32> to vector<1x4x1xf32>
      %cst_120 = arith.constant dense<0.000000e+00> : vector<1xf32>
      %561 = vector.multi_reduction <add>, %560, %cst_120 [1, 2] : vector<1x4x1xf32> to vector<1xf32>
      %562 = vector.shape_cast %561 : vector<1xf32> to vector<1x1x1xf32>
      %563 = vector.extract %562[0, 0, 0] : f32 from vector<1x1x1xf32>
      %cst_121 = arith.constant 2.500000e-01 : f32
      %564 = arith.mulf %563, %cst_121 : f32
      %c0_122 = arith.constant 0 : index
      %565 = memref.load %arg12[%c0_122] : memref<3xf32, #tpu.memory_space<smem>>
      memref.store %564, %arg12[%c0_122] : memref<3xf32, #tpu.memory_space<smem>>
      %566 = arith.subf %558, %548 : vector<4x1xf32>
      %567 = vector.shape_cast %566 : vector<4x1xf32> to vector<1x4x1xf32>
      %cst_123 = arith.constant dense<0.000000e+00> : vector<1xf32>
      %568 = vector.multi_reduction <add>, %567, %cst_123 [1, 2] : vector<1x4x1xf32> to vector<1xf32>
      %569 = vector.shape_cast %568 : vector<1xf32> to vector<1x1x1xf32>
      %570 = vector.extract %569[0, 0, 0] : f32 from vector<1x1x1xf32>
      %cst_124 = arith.constant 2.500000e-01 : f32
      %571 = arith.mulf %570, %cst_124 : f32
      %c1 = arith.constant 1 : index
      %572 = memref.load %arg12[%c1] : memref<3xf32, #tpu.memory_space<smem>>
      memref.store %571, %arg12[%c1] : memref<3xf32, #tpu.memory_space<smem>>
      %573 = arith.subf %548, %48 : vector<4x1xf32>
      %574 = vector.shape_cast %573 : vector<4x1xf32> to vector<1x4x1xf32>
      %cst_125 = arith.constant dense<0.000000e+00> : vector<1xf32>
      %575 = vector.multi_reduction <add>, %574, %cst_125 [1, 2] : vector<1x4x1xf32> to vector<1xf32>
      %576 = vector.shape_cast %575 : vector<1xf32> to vector<1x1x1xf32>
      %577 = vector.extract %576[0, 0, 0] : f32 from vector<1x1x1xf32>
      %cst_126 = arith.constant 2.500000e-01 : f32
      %578 = arith.mulf %577, %cst_126 : f32
      %c2 = arith.constant 2 : index
      %579 = memref.load %arg12[%c2] : memref<3xf32, #tpu.memory_space<smem>>
      memref.store %578, %arg12[%c2] : memref<3xf32, #tpu.memory_space<smem>>
      %c0_127 = arith.constant 0 : index
      %c0_128 = arith.constant 0 : index
      %580 = vector.load %arg5[%c0_127, %c0_128] : memref<16x48xf32, #tpu.memory_space<vmem>>, vector<16x48xf32>
      %cst_129 = arith.constant dense<0.000000e+00> : vector<4x48xf32>
      %581 = tpu.matmul %23, %580, %cst_129 {dimension_numbers = #tpu.dot_dimension_numbers<[1], [0], [0], [1], [0, 0, 1, 1], [], []>} : vector<4x16xf32>, vector<16x48xf32>, vector<4x48xf32> -> vector<4x48xf32>
      %c0_130 = arith.constant 0 : index
      %c0_131 = arith.constant 0 : index
      %582 = vector.load %arg6[%c0_130, %c0_131] : memref<1x48xf32, #tpu.memory_space<vmem>>, vector<1x48xf32>
      %583 = vector.broadcast %582 : vector<1x48xf32> to vector<4x48xf32>
      %584 = arith.addf %581, %583 : vector<4x48xf32>
      %cst_132 = arith.constant 0.000000e+00 : f32
      %585 = vector.broadcast %cst_132 : f32 to vector<4x16xf32>
      %586 = vector.extract_strided_slice %584 {offsets = [0, 0], sizes = [4, 16], strides = [1, 1]} : vector<4x48xf32> to vector<4x16xf32>
      %c0_133 = arith.constant 0 : index
      %c0_134 = arith.constant 0 : index
      %c0_135 = arith.constant 0 : index
      %587 = vector.load %arg10[%c0_133, %c0_134, %c0_135] : memref<3x4x16xf32, #tpu.memory_space<vmem>>, vector<1x4x16xf32>
      %588 = vector.shape_cast %587 : vector<1x4x16xf32> to vector<4x16xf32>
      %589 = vector.shape_cast %586 : vector<4x16xf32> to vector<1x4x16xf32>
      tpu.vector_store %arg10[%c0_133, %c0_134, %c0_135], %589 {strides = array<i32>} : memref<3x4x16xf32, #tpu.memory_space<vmem>>, vector<1x4x16xf32>,
      %590 = arith.addf %585, %586 : vector<4x16xf32>
      %591 = vector.extract_strided_slice %584 {offsets = [0, 16], sizes = [4, 16], strides = [1, 1]} : vector<4x48xf32> to vector<4x16xf32>
      %c1_136 = arith.constant 1 : index
      %c0_137 = arith.constant 0 : index
      %c0_138 = arith.constant 0 : index
      %592 = vector.load %arg10[%c1_136, %c0_137, %c0_138] : memref<3x4x16xf32, #tpu.memory_space<vmem>>, vector<1x4x16xf32>
      %593 = vector.shape_cast %592 : vector<1x4x16xf32> to vector<4x16xf32>
      %594 = vector.shape_cast %591 : vector<4x16xf32> to vector<1x4x16xf32>
      tpu.vector_store %arg10[%c1_136, %c0_137, %c0_138], %594 {strides = array<i32>} : memref<3x4x16xf32, #tpu.memory_space<vmem>>, vector<1x4x16xf32>,
      %595 = arith.addf %590, %591 : vector<4x16xf32>
      %596 = vector.extract_strided_slice %584 {offsets = [0, 32], sizes = [4, 16], strides = [1, 1]} : vector<4x48xf32> to vector<4x16xf32>
      %c2_139 = arith.constant 2 : index
      %c0_140 = arith.constant 0 : index
      %c0_141 = arith.constant 0 : index
      %597 = vector.load %arg10[%c2_139, %c0_140, %c0_141] : memref<3x4x16xf32, #tpu.memory_space<vmem>>, vector<1x4x16xf32>
      %598 = vector.shape_cast %597 : vector<1x4x16xf32> to vector<4x16xf32>
      %599 = vector.shape_cast %596 : vector<4x16xf32> to vector<1x4x16xf32>
      tpu.vector_store %arg10[%c2_139, %c0_140, %c0_141], %599 {strides = array<i32>} : memref<3x4x16xf32, #tpu.memory_space<vmem>>, vector<1x4x16xf32>,
      %600 = arith.addf %595, %596 : vector<4x16xf32>
      %cst_142 = arith.constant 0.333333343 : f32
      %601 = vector.broadcast %cst_142 : f32 to vector<4x16xf32>
      %602 = arith.mulf %600, %601 : vector<4x16xf32>
      %c0_143 = arith.constant 0 : index
      %c0_144 = arith.constant 0 : index
      %603 = vector.load %arg11[%c0_143, %c0_144] : memref<4x16xf32, #tpu.memory_space<vmem>>, vector<4x16xf32>
      tpu.vector_store %arg11[%c0_143, %c0_144], %602 {strides = array<i32>} : memref<4x16xf32, #tpu.memory_space<vmem>>, vector<4x16xf32>,
    } else {
    }
    return
  }
  func.func @transform_0(%arg0: i32) -> (i32, i32) {
    %c0_i32 = arith.constant 0 : i32
    %c0_i32_0 = arith.constant 0 : i32
    return %c0_i32, %arg0 : i32, i32
  }
  func.func @transform_1(%arg0: i32) -> (i32, i32) {
    %c0_i32 = arith.constant 0 : i32
    %c0_i32_0 = arith.constant 0 : i32
    return %arg0, %c0_i32 : i32, i32
  }
  func.func @transform_2(%arg0: i32) -> (i32, i32) {
    %c0_i32 = arith.constant 0 : i32
    %c0_i32_0 = arith.constant 0 : i32
    %c0_i32_1 = arith.constant 0 : i32
    return %c0_i32, %c0_i32_0 : i32, i32
  }
  func.func @transform_3(%arg0: i32) -> (i32, i32) {
    %c0_i32 = arith.constant 0 : i32
    %c0_i32_0 = arith.constant 0 : i32
    %c0_i32_1 = arith.constant 0 : i32
    return %c0_i32, %c0_i32_0 : i32, i32
  }
  func.func @transform_4(%arg0: i32) -> (i32, i32) {
    %c0_i32 = arith.constant 0 : i32
    %c0_i32_0 = arith.constant 0 : i32
    %c0_i32_1 = arith.constant 0 : i32
    return %c0_i32, %c0_i32_0 : i32, i32
  }
  func.func @transform_5(%arg0: i32) -> (i32, i32) {
    %c0_i32 = arith.constant 0 : i32
    %c0_i32_0 = arith.constant 0 : i32
    %c0_i32_1 = arith.constant 0 : i32
    return %c0_i32, %c0_i32_0 : i32, i32
  }
  func.func @transform_6(%arg0: i32) -> (i32, i32) {
    %c0_i32 = arith.constant 0 : i32
    %c0_i32_0 = arith.constant 0 : i32
    %c0_i32_1 = arith.constant 0 : i32
    return %c0_i32, %c0_i32_0 : i32, i32
  }
  func.func @transform_7(%arg0: i32) -> (i32, i32) {
    %c0_i32 = arith.constant 0 : i32
    %c0_i32_0 = arith.constant 0 : i32
    %c0_i32_1 = arith.constant 0 : i32
    return %c0_i32, %c0_i32_0 : i32, i32
  }
  func.func @transform_8(%arg0: i32) -> (i32, i32) {
    %c0_i32 = arith.constant 0 : i32
    %c0_i32_0 = arith.constant 0 : i32
    %c0_i32_1 = arith.constant 0 : i32
    return %c0_i32, %c0_i32_0 : i32, i32
  }
  func.func @transform_9(%arg0: i32) -> (i32, i32, i32) {
    %c0_i32 = arith.constant 0 : i32
    %c0_i32_0 = arith.constant 0 : i32
    %c0_i32_1 = arith.constant 0 : i32
    %c0_i32_2 = arith.constant 0 : i32
    return %c0_i32, %c0_i32_0, %c0_i32_1 : i32, i32, i32
  }
  func.func @transform_10(%arg0: i32) -> (i32, i32) {
    %c0_i32 = arith.constant 0 : i32
    %c0_i32_0 = arith.constant 0 : i32
    %c0_i32_1 = arith.constant 0 : i32
    return %c0_i32, %c0_i32_0 : i32, i32
  }
  func.func @transform_11(%arg0: i32) -> i32 {
    %c0_i32 = arith.constant 0 : i32
    %c0_i32_0 = arith.constant 0 : i32
    return %c0_i32 : i32
  }
}

</mosaic_0001>

<llo_original>
// kernel: tpu_custom_call.1
$region0: #{tpu_custom_call.1}
  #allocation0 [shape = 'u32[]', space=smem, size = 0x4, offset = 0x4, fixed_abs, tag = 'smem constant byte address 0x4 - core index']
  #allocation1 [shape = 'u32[72,128]{1,0:T(1,128)}', space=vmem, size = 0x9000, scoped, tag = 'internal scratch']
  #allocation2 [shape = 'f32[4,32]{1,0:T(4,128)}', space=vmem, size = 0x800, scoped, tag = 'scratch operand']
  %s0 = inlined_call_operand.vmem [shape: f32[4,256], index: 0, kind: input, shape index: {}]
  %s1 = inlined_call_operand.vmem [shape: f32[256,32], index: 1, kind: input, shape index: {}]
  %s2 = inlined_call_operand.vmem [shape: f32[1,32], index: 2, kind: input, shape index: {}]
  %s3 = inlined_call_operand.vmem [shape: f32[4,16], index: 3, kind: input, shape index: {}]
  %s4 = inlined_call_operand.vmem [shape: f32[16,48], index: 4, kind: input, shape index: {}]
  %s5 = inlined_call_operand.vmem [shape: f32[1,48], index: 5, kind: input, shape index: {}]
  %s6 = inlined_call_operand.hbm [shape: f32[4,16], index: 6, kind: output, shape index: {0}]
  %s7 = inlined_call_operand.hbm [shape: f32[4,16], index: 7, kind: output, shape index: {1}]
  %s8 = inlined_call_operand.hbm [shape: f32[4,16], index: 8, kind: output, shape index: {2}]
  %s9 = inlined_call_operand.hbm [shape: f32[3,4,16], index: 9, kind: output, shape index: {3}]
  %s10 = inlined_call_operand.hbm [shape: f32[4,16], index: 10, kind: output, shape index: {4}]
  %s11 = inlined_call_operand.hbm [shape: f32[3], index: 11, kind: output, shape index: {5}]
  %12 = xla_tuple %s6, %s7, %s8, %s9, %s10, %s11
  %s13 = sld [smem:[#allocation0]]
  $region82: #{tpu_custom_call.1} parent=0
    _
  %s15 = ssub.s32 1, %s13
  %s16 = scalar_select 0, %s15, %s13
  $region1: #{tpu_custom_call.1} parent=0
    #allocation3 [shape = 'u8[2048]{0}', space=vmem, size = 0x800, scoped, tag = 'output window, operand 0, single buffered']
    #allocation4 [shape = 's32[1]{0}', space=sflag, size = 0x4, scoped, tag = 'scoped memory for tpu_custom_call.1']
    #allocation5 [shape = 's32[1]{0}', space=sflag, size = 0x4, scoped, tag = 'scoped memory for tpu_custom_call.1']
    #allocation6 [shape = 'u8[2048]{0}', space=vmem, size = 0x800, scoped, tag = 'output window, operand 1, single buffered']
    #allocation7 [shape = 's32[1]{0}', space=sflag, size = 0x4, scoped, tag = 'scoped memory for tpu_custom_call.1']
    #allocation8 [shape = 'u8[2048]{0}', space=vmem, size = 0x800, scoped, tag = 'output window, operand 2, single buffered']
    #allocation9 [shape = 'u8[6144]{0}', space=vmem, size = 0x1800, scoped, tag = 'output window, operand 3, single buffered']
    #allocation10 [shape = 's32[1]{0}', space=sflag, size = 0x4, scoped, tag = 'scoped memory for tpu_custom_call.1']
    #allocation11 [shape = 'u8[2048]{0}', space=vmem, size = 0x800, scoped, tag = 'output window, operand 4, single buffered']
    #allocation12 [shape = 'u8[512]{0}', space=smem, size = 0x200, scoped, tag = 'output window, operand 5, single buffered']
    %17 = vsyncpa [#allocation4], 0
    %18 = vsyncpa [#allocation7], 0
    %19 = vsyncpa [#allocation10], 0
    %20 = vsyncpa [#allocation5], 0
    // Predicated region
    $region2: #{tpu_custom_call.1} parent=1 // pred_check
      _
    $region3: #{tpu_custom_call.1} parent=1 // pred_check_branch
      %22 = sbr.rel (0) target = $region5
    $region4: #{tpu_custom_call.1} parent=1 // pred_region
      _
    $region5: #{tpu_custom_call.1} parent=1 // pred_fallthru
      _
    // Predicated region
    $region6: #{tpu_custom_call.1} parent=1 // pred_check
      _
    $region7: #{tpu_custom_call.1} parent=1 // pred_check_branch
      %24 = sbr.rel (0) target = $region9
    $region8: #{tpu_custom_call.1} parent=1 // pred_region
      _
    $region9: #{tpu_custom_call.1} parent=1 // pred_fallthru
      _
    // Predicated region
    $region10: #{tpu_custom_call.1} parent=1 // pred_check
      _
    $region11: #{tpu_custom_call.1} parent=1 // pred_check_branch
      %26 = sbr.rel (0) target = $region13
    $region12: #{tpu_custom_call.1} parent=1 // pred_region
      _
    $region13: #{tpu_custom_call.1} parent=1 // pred_fallthru
      _
    // Predicated region
    $region14: #{tpu_custom_call.1} parent=1 // pred_check
      _
    $region15: #{tpu_custom_call.1} parent=1 // pred_check_branch
      %28 = sbr.rel (0) target = $region17
    $region16: #{tpu_custom_call.1} parent=1 // pred_region
      _
    $region17: #{tpu_custom_call.1} parent=1 // pred_fallthru
      _
    // Predicated region
    $region18: #{tpu_custom_call.1} parent=1 // pred_check
      _
    $region19: #{tpu_custom_call.1} parent=1 // pred_check_branch
      %30 = sbr.rel (0) target = $region21
    $region20: #{tpu_custom_call.1} parent=1 // pred_region
      _
    $region21: #{tpu_custom_call.1} parent=1 // pred_fallthru
      _
    // Predicated region
    $region22: #{tpu_custom_call.1} parent=1 // pred_check
      _
    $region23: #{tpu_custom_call.1} parent=1 // pred_check_branch
      %32 = sbr.rel (0) target = $region25
    $region24: #{tpu_custom_call.1} parent=1 // pred_region
      _
    $region25: #{tpu_custom_call.1} parent=1 // pred_fallthru
      _
    %p33 = scmp.eq.s32.totalorder 0, 0
    // Predicated region
    $region26: #{tpu_custom_call.1} parent=1 // pred_check
      %p34 = pneg %p33
    $region27: #{tpu_custom_call.1} parent=1 // pred_check_branch
      %36 = sbr.rel (%p34) target = $region29
    $region28: #{tpu_custom_call.1} parent=1 // pred_region
      %vm37 = vcmask 257024
      %38 = vst.msk [vmem:[#allocation2] sm:$0xf] %vm37, 0.0
    $region29: #{tpu_custom_call.1} parent=1 // pred_fallthru
      _
    %v39 = vld [vmem:[#allocation2] sm:$0xf]
    %v40 = vld [vmem:[%s0] sm:$0xff]
    %v41 = vld [vmem:[%s1] sm:$0xff]
    %v42 = vld [vmem:[%s1 + $0x8] sm:$0xff]
    %v43 = vld [vmem:[%s1 + $0x10] sm:$0xff]
    %v44 = vld [vmem:[%s1 + $0x18] sm:$0xff]
    %v45 = vld [vmem:[%s1 + $0x20] sm:$0xff]
    %v46 = vld [vmem:[%s1 + $0x28] sm:$0xff]
    %v47 = vld [vmem:[%s1 + $0x30] sm:$0xff]
    %v48 = vld [vmem:[%s1 + $0x38] sm:$0xff]
    %v49 = vld [vmem:[%s1 + $0x40] sm:$0xff]
    %v50 = vld [vmem:[%s1 + $0x48] sm:$0xff]
    %v51 = vld [vmem:[%s1 + $0x50] sm:$0xff]
    %v52 = vld [vmem:[%s1 + $0x58] sm:$0xff]
    %v53 = vld [vmem:[%s1 + $0x60] sm:$0xff]
    %v54 = vld [vmem:[%s1 + $0x68] sm:$0xff]
    %v55 = vld [vmem:[%s1 + $0x70] sm:$0xff]
    %v56 = vld [vmem:[%s1 + $0x78] sm:$0xff]
    %v57 = vld [vmem:[%s1 + $0x80] sm:$0xff]
    %v58 = vld [vmem:[%s1 + $0x88] sm:$0xff]
    %v59 = vld [vmem:[%s1 + $0x90] sm:$0xff]
    %v60 = vld [vmem:[%s1 + $0x98] sm:$0xff]
    %v61 = vld [vmem:[%s1 + $0xa0] sm:$0xff]
    %v62 = vld [vmem:[%s1 + $0xa8] sm:$0xff]
    %v63 = vld [vmem:[%s1 + $0xb0] sm:$0xff]
    %v64 = vld [vmem:[%s1 + $0xb8] sm:$0xff]
    %v65 = vld [vmem:[%s1 + $0xc0] sm:$0xff]
    %v66 = vld [vmem:[%s1 + $0xc8] sm:$0xff]
    %v67 = vld [vmem:[%s1 + $0xd0] sm:$0xff]
    %v68 = vld [vmem:[%s1 + $0xd8] sm:$0xff]
    %v69 = vld [vmem:[%s1 + $0xe0] sm:$0xff]
    %v70 = vld [vmem:[%s1 + $0xe8] sm:$0xff]
    %v71 = vld [vmem:[%s1 + $0xf0] sm:$0xff]
    %v72 = vld [vmem:[%s1 + $0xf8] sm:$0xff]
    %74 = vst [vmem:[#allocation1] ss:$2 sm:$0xff] %v40
    %v75 = vld.sshfl [vmem:[#allocation1] sm:$0xff pattern:$0x75316420]
    %v76 = vld.sshfl [vmem:[#allocation1 + $0x8] sm:$0xff pattern:$0x75316420]
    %79 = vmatpush.msra.mxu0 %v56
    %80 = vmatpush.msra.mxu0 %v55
    %81 = vmatpush.msra.mxu0 %v54
    %82 = vmatpush.msra.mxu0 %v53
    %83 = vmatpush.msra.mxu0 %v52
    %84 = vmatpush.msra.mxu0 %v51
    %85 = vmatpush.msra.mxu0 %v50
    %86 = vmatpush.msra.mxu0 %v49
    %87 = vmatpush.msra.mxu0 %v48
    %88 = vmatpush.msra.mxu0 %v47
    %89 = vmatpush.msra.mxu0 %v46
    %90 = vmatpush.msra.mxu0 %v45
    %91 = vmatpush.msra.mxu0 %v44
    %92 = vmatpush.msra.mxu0 %v43
    %93 = vmatpush.msra.mxu0 %v42
    %94 = vmatpush.msra.mxu0 %v41
    %95 = vmatmul.f32.gmra.mxu0 %v75
    %v96 = vpop.f32.mrf.mxu0
    %v97 = vadd.f32 0.0, %v96
    %98 = vdwg.mxu0
    %99 = vmatpush.msra.mxu0 %v72
    %100 = vmatpush.msra.mxu0 %v71
    %101 = vmatpush.msra.mxu0 %v70
    %102 = vmatpush.msra.mxu0 %v69
    %103 = vmatpush.msra.mxu0 %v68
    %104 = vmatpush.msra.mxu0 %v67
    %105 = vmatpush.msra.mxu0 %v66
    %106 = vmatpush.msra.mxu0 %v65
    %107 = vmatpush.msra.mxu0 %v64
    %108 = vmatpush.msra.mxu0 %v63
    %109 = vmatpush.msra.mxu0 %v62
    %110 = vmatpush.msra.mxu0 %v61
    %111 = vmatpush.msra.mxu0 %v60
    %112 = vmatpush.msra.mxu0 %v59
    %113 = vmatpush.msra.mxu0 %v58
    %114 = vmatpush.msra.mxu0 %v57
    %115 = vmatmul.f32.gmra.mxu0 %v76
    %v116 = vpop.f32.mrf.mxu0
    %v117 = vadd.f32 %v97, %v116
    %118 = vdwg.mxu0
    %v119 = vadd.f32 %v39, %v117
    %vm120 = vcmask 257024
    %121 = vst.msk [vmem:[#allocation2] sm:$0xf] %vm120, %v119
    // Predicated region
    $region30: #{tpu_custom_call.1} parent=1 // pred_check
      %p122 = pneg %p33
    $region31: #{tpu_custom_call.1} parent=1 // pred_check_branch
      %124 = sbr.rel (%p122) target = $region33
    $region32: #{tpu_custom_call.1} parent=1 // pred_region
      %v125 = vld [vmem:[#allocation2] sm:$0xf]
      %v126 = vld [vmem:[%s2] sm:$0x1]
      %v128 = vperm.slane %v126, 0
      %v130 = vadd.f32 %v125, %v128
      %v131 = vmul.f32 %v130, 0.5
      %v132 = vmul.f32 %v131, 1.442695
      %v133 = vpow.pop %v132
      %v134 = vld [vmem:[%s3] sm:$0xf]
      %136 = vrot.lane.b32.xlu0 %v134, 16
      %v137 = vpop.permute.xlu0 %136
      %v139 = vmul.f32 %v133, %v137
      %141 = vrot.lane.b32.xlu0 %v139, 112
      %v142 = vpop.permute.xlu0 %141
      %v144 = vadd.f32 %v130, %v142
      %vm145 = vcmask 125952
      %146 = vst.msk [vmem:[#allocation3] sm:$0xf] %vm145, %v144
      %147 = vst.msk [vmem:[#allocation6] sm:$0xf] %vm145, %v130
      %149 = vrot.lane.b32.xlu0 %v130, 112
      %v150 = vpop.permute.xlu0 %149
      %152 = vst.msk [vmem:[#allocation8] sm:$0xf] %vm145, %v150
      %v153 = vsub.f32 0.0, %v130
      %v154 = vmul.f32 %v153, 1.442695
      %v155 = vpow.pop %v154
      %v156 = vadd.f32 %v130, 1.837877
      %v157 = vmul.f32 %v156, -0.5
      %v158 = vsub.f32 %v144, %v130
      %v159 = vmul.f32 %v158, %v158
      %v160 = vmul.f32 %v159, 0.5
      %162 = vrot.lane.b32.xlu0 %v155, 112
      %v163 = vpop.permute.xlu0 %162
      %v165 = vmul.f32 %v160, %v163
      %167 = vrot.lane.b32.xlu0 %v165, 16
      %v168 = vpop.permute.xlu0 %167
      %v170 = vsub.f32 %v157, %v168
      %172 = vrot.lane.b32.xlu0 %v170, 112
      %v173 = vpop.permute.xlu0 %172
      %v175 = vsel %vm145, %v173, 0.0
      %176 = vadd.xlane.f32.xlu0 %v175
      %v177 = vpop.xlane.xlu0 %176
      %v178 = vmul.f32 %v144, 0.5
      %v179 = vmul.f32 %v178, %v144
      %v180 = vsub.f32 -0.9189385, %v179
      %v181 = vsel %vm145, %v180, 0.0
      %182 = vadd.xlane.f32.xlu0 %v181
      %v183 = vpop.xlane.xlu0 %182
      %v184 = vlaneseq
      %v185 = vshrl.u32 %v184, 7
      %v186 = vlaneseq
      %v187 = vand.u32 %v186, 127
      %vm188 = vcmp.eq.s32.totalorder %v187, 0
      %vm189 = vcmp.eq.s32.totalorder %v185, 2
      %v190 = vsel %vm189, -1.1016167, -6.9077554
      %v191 = vsel %vm188, %v190, -1.0986123
      %vm192 = vcmp.eq.s32.totalorder %v187, 1
      %v193 = vsel %vm192, -1.1016167, %v191
      %194 = vxpose.xlu0.b32.start [1/16] %v130, 128
      %195 = vxpose.xlu0.b32.cont [2/16] 0.0, 128
      %196 = vxpose.xlu0.b32.cont [3/16] 0.0, 128
      %197 = vxpose.xlu0.b32.cont [4/16] 0.0, 128
      %198 = vxpose.xlu0.b32.cont [5/16] 0.0, 128
      %199 = vxpose.xlu0.b32.cont [6/16] 0.0, 128
      %200 = vxpose.xlu0.b32.cont [7/16] 0.0, 128
      %201 = vxpose.xlu0.b32.cont [8/16] 0.0, 128
      %202 = vxpose.xlu0.b32.cont [9/16] 0.0, 128
      %203 = vxpose.xlu0.b32.cont [10/16] 0.0, 128
      %204 = vxpose.xlu0.b32.cont [11/16] 0.0, 128
      %205 = vxpose.xlu0.b32.cont [12/16] 0.0, 128
      %206 = vxpose.xlu0.b32.cont [13/16] 0.0, 128
      %207 = vxpose.xlu0.b32.cont [14/16] 0.0, 128
      %208 = vxpose.xlu0.b32.cont [15/16] 0.0, 128
      %209 = vxpose.xlu0.b32.end [16/16] 0.0, 128
      %v210 = vpop.trf.xlu0
      %v211 = vpop.trf.xlu0
      %v212 = vpop.trf.xlu0
      %v213 = vpop.trf.xlu0
      %v214 = vpop.trf.xlu0
      %v215 = vpop.trf.xlu0
      %v216 = vpop.trf.xlu0
      %v217 = vpop.trf.xlu0
      %v218 = vpop.trf.xlu0
      %v219 = vpop.trf.xlu0
      %v220 = vpop.trf.xlu0
      %v221 = vpop.trf.xlu0
      %v222 = vpop.trf.xlu0
      %v223 = vpop.trf.xlu0
      %v224 = vpop.trf.xlu0
      %v225 = vpop.trf.xlu0
      %226 = vxpose.xlu0.b32.start [1/16] %v150, 128
      %227 = vxpose.xlu0.b32.cont [2/16] 0.0, 128
      %228 = vxpose.xlu0.b32.cont [3/16] 0.0, 128
      %229 = vxpose.xlu0.b32.cont [4/16] 0.0, 128
      %230 = vxpose.xlu0.b32.cont [5/16] 0.0, 128
      %231 = vxpose.xlu0.b32.cont [6/16] 0.0, 128
      %232 = vxpose.xlu0.b32.cont [7/16] 0.0, 128
      %233 = vxpose.xlu0.b32.cont [8/16] 0.0, 128
      %234 = vxpose.xlu0.b32.cont [9/16] 0.0, 128
      %235 = vxpose.xlu0.b32.cont [10/16] 0.0, 128
      %236 = vxpose.xlu0.b32.cont [11/16] 0.0, 128
      %237 = vxpose.xlu0.b32.cont [12/16] 0.0, 128
      %238 = vxpose.xlu0.b32.cont [13/16] 0.0, 128
      %239 = vxpose.xlu0.b32.cont [14/16] 0.0, 128
      %240 = vxpose.xlu0.b32.cont [15/16] 0.0, 128
      %241 = vxpose.xlu0.b32.end [16/16] 0.0, 128
      %v242 = vpop.trf.xlu0
      %v243 = vpop.trf.xlu0
      %v244 = vpop.trf.xlu0
      %v245 = vpop.trf.xlu0
      %v246 = vpop.trf.xlu0
      %v247 = vpop.trf.xlu0
      %v248 = vpop.trf.xlu0
      %v249 = vpop.trf.xlu0
      %v250 = vpop.trf.xlu0
      %v251 = vpop.trf.xlu0
      %v252 = vpop.trf.xlu0
      %v253 = vpop.trf.xlu0
      %v254 = vpop.trf.xlu0
      %v255 = vpop.trf.xlu0
      %v256 = vpop.trf.xlu0
      %v257 = vpop.trf.xlu0
      %258 = vxpose.xlu0.b32.start [1/16] %v163, 128
      %259 = vxpose.xlu0.b32.cont [2/16] 0.0, 128
      %260 = vxpose.xlu0.b32.cont [3/16] 0.0, 128
      %261 = vxpose.xlu0.b32.cont [4/16] 0.0, 128
      %262 = vxpose.xlu0.b32.cont [5/16] 0.0, 128
      %263 = vxpose.xlu0.b32.cont [6/16] 0.0, 128
      %264 = vxpose.xlu0.b32.cont [7/16] 0.0, 128
      %265 = vxpose.xlu0.b32.cont [8/16] 0.0, 128
      %266 = vxpose.xlu0.b32.cont [9/16] 0.0, 128
      %267 = vxpose.xlu0.b32.cont [10/16] 0.0, 128
      %268 = vxpose.xlu0.b32.cont [11/16] 0.0, 128
      %269 = vxpose.xlu0.b32.cont [12/16] 0.0, 128
      %270 = vxpose.xlu0.b32.cont [13/16] 0.0, 128
      %271 = vxpose.xlu0.b32.cont [14/16] 0.0, 128
      %272 = vxpose.xlu0.b32.cont [15/16] 0.0, 128
      %273 = vxpose.xlu0.b32.end [16/16] 0.0, 128
      %v274 = vpop.trf.xlu0
      %v275 = vpop.trf.xlu0
      %v276 = vpop.trf.xlu0
      %v277 = vpop.trf.xlu0
      %v278 = vpop.trf.xlu0
      %v279 = vpop.trf.xlu0
      %v280 = vpop.trf.xlu0
      %v281 = vpop.trf.xlu0
      %v282 = vpop.trf.xlu0
      %v283 = vpop.trf.xlu0
      %v284 = vpop.trf.xlu0
      %v285 = vpop.trf.xlu0
      %v286 = vpop.trf.xlu0
      %v287 = vpop.trf.xlu0
      %v288 = vpop.trf.xlu0
      %v289 = vpop.trf.xlu0
      %v290 = vadd.f32 %v242, 1.837877
      %v291 = vmul.f32 %v290, -0.5
      %293 = vset.pattern.permute.xlu0 0
      %294 = vperm.xlu0 %293, %v144
      %v295 = vpop.permute.xlu0 %294
      %v297 = vperm.slane %v210, 0
      %v298 = vsub.f32 %v295, %v297
      %v299 = vmul.f32 %v298, %v298
      %v300 = vmul.f32 %v299, 0.5
      %v301 = vperm.slane %v274, 0
      %v302 = vmul.f32 %v300, %v301
      %v303 = vperm.slane %v291, 0
      %v304 = vsub.f32 %v303, %v302
      %v305 = vadd.f32 %v304, 0.0
      %v306 = vadd.f32 %v304, %v193
      %vm307 = vcmask 27648
      %v308 = vsel %vm307, %v306, -inf
      %309 = vmax.xlane.f32.xlu0 %v308
      %v310 = vpop.xlane.xlu0 %309
      %v311 = vadd.f32 %v310, 0.0
      %v312 = vsub.f32 %v306, %v310
      %v313 = vmul.f32 %v312, 1.442695
      %v314 = vpow.pop %v313
      %v315 = vsel %vm307, %v314, 0.0
      %316 = vadd.xlane.f32.xlu0 %v315
      %v317 = vpop.xlane.xlu0 %316
      %v318 = vlog2.pop %v317
      %v319 = vmul.f32 %v318, 0.6931472
      %v320 = vadd.f32 %v311, %v319
      %321 = vset.pattern.permute.xlu0 1
      %322 = vperm.xlu0 %321, %v144
      %v323 = vpop.permute.xlu0 %322
      %v325 = vperm.slane %v210, 1
      %v326 = vsub.f32 %v323, %v325
      %v327 = vmul.f32 %v326, %v326
      %v328 = vmul.f32 %v327, 0.5
      %v329 = vperm.slane %v274, 1
      %v330 = vmul.f32 %v328, %v329
      %v331 = vperm.slane %v291, 1
      %v332 = vsub.f32 %v331, %v330
      %v333 = vadd.f32 %v305, %v332
      %v334 = vadd.f32 %v332, %v193
      %v335 = vsel %vm307, %v334, -inf
      %336 = vmax.xlane.f32.xlu0 %v335
      %v337 = vpop.xlane.xlu0 %336
      %v338 = vadd.f32 %v320, %v337
      %v339 = vsub.f32 %v334, %v337
      %v340 = vmul.f32 %v339, 1.442695
      %v341 = vpow.pop %v340
      %v342 = vsel %vm307, %v341, 0.0
      %343 = vadd.xlane.f32.xlu0 %v342
      %v344 = vpop.xlane.xlu0 %343
      %v345 = vlog2.pop %v344
      %v346 = vmul.f32 %v345, 0.6931472
      %v347 = vadd.f32 %v338, %v346
      %348 = vset.pattern.permute.xlu0 2
      %349 = vperm.xlu0 %348, %v144
      %v350 = vpop.permute.xlu0 %349
      %v352 = vperm.slane %v210, 2
      %v353 = vsub.f32 %v350, %v352
      %v354 = vmul.f32 %v353, %v353
      %v355 = vmul.f32 %v354, 0.5
      %v356 = vperm.slane %v274, 2
      %v357 = vmul.f32 %v355, %v356
      %v358 = vperm.slane %v291, 2
      %v359 = vsub.f32 %v358, %v357
      %v360 = vadd.f32 %v333, %v359
      %v361 = vadd.f32 %v359, %v193
      %v362 = vsel %vm307, %v361, -inf
      %363 = vmax.xlane.f32.xlu0 %v362
      %v364 = vpop.xlane.xlu0 %363
      %v365 = vadd.f32 %v347, %v364
      %v366 = vsub.f32 %v361, %v364
      %v367 = vmul.f32 %v366, 1.442695
      %v368 = vpow.pop %v367
      %v369 = vsel %vm307, %v368, 0.0
      %370 = vadd.xlane.f32.xlu0 %v369
      %v371 = vpop.xlane.xlu0 %370
      %v372 = vlog2.pop %v371
      %v373 = vmul.f32 %v372, 0.6931472
      %v374 = vadd.f32 %v365, %v373
      %375 = vset.pattern.permute.xlu0 3
      %376 = vperm.xlu0 %375, %v144
      %v377 = vpop.permute.xlu0 %376
      %v379 = vperm.slane %v210, 3
      %v380 = vsub.f32 %v377, %v379
      %v381 = vmul.f32 %v380, %v380
      %v382 = vmul.f32 %v381, 0.5
      %v383 = vperm.slane %v274, 3
      %v384 = vmul.f32 %v382, %v383
      %v385 = vperm.slane %v291, 3
      %v386 = vsub.f32 %v385, %v384
      %v387 = vadd.f32 %v360, %v386
      %v388 = vadd.f32 %v386, %v193
      %v389 = vsel %vm307, %v388, -inf
      %390 = vmax.xlane.f32.xlu0 %v389
      %v391 = vpop.xlane.xlu0 %390
      %v392 = vadd.f32 %v374, %v391
      %v393 = vsub.f32 %v388, %v391
      %v394 = vmul.f32 %v393, 1.442695
      %v395 = vpow.pop %v394
      %v396 = vsel %vm307, %v395, 0.0
      %397 = vadd.xlane.f32.xlu0 %v396
      %v398 = vpop.xlane.xlu0 %397
      %v399 = vlog2.pop %v398
      %v400 = vmul.f32 %v399, 0.6931472
      %v401 = vadd.f32 %v392, %v400
      %402 = vset.pattern.permute.xlu0 4
      %403 = vperm.xlu0 %402, %v144
      %v404 = vpop.permute.xlu0 %403
      %v406 = vperm.slane %v210, 4
      %v407 = vsub.f32 %v404, %v406
      %v408 = vmul.f32 %v407, %v407
      %v409 = vmul.f32 %v408, 0.5
      %v410 = vperm.slane %v274, 4
      %v411 = vmul.f32 %v409, %v410
      %v412 = vperm.slane %v291, 4
      %v413 = vsub.f32 %v412, %v411
      %v414 = vadd.f32 %v387, %v413
      %v415 = vadd.f32 %v413, %v193
      %v416 = vsel %vm307, %v415, -inf
      %417 = vmax.xlane.f32.xlu0 %v416
      %v418 = vpop.xlane.xlu0 %417
      %v419 = vadd.f32 %v401, %v418
      %v420 = vsub.f32 %v415, %v418
      %v421 = vmul.f32 %v420, 1.442695
      %v422 = vpow.pop %v421
      %v423 = vsel %vm307, %v422, 0.0
      %424 = vadd.xlane.f32.xlu0 %v423
      %v425 = vpop.xlane.xlu0 %424
      %v426 = vlog2.pop %v425
      %v427 = vmul.f32 %v426, 0.6931472
      %v428 = vadd.f32 %v419, %v427
      %429 = vset.pattern.permute.xlu0 5
      %430 = vperm.xlu0 %429, %v144
      %v431 = vpop.permute.xlu0 %430
      %v433 = vperm.slane %v210, 5
      %v434 = vsub.f32 %v431, %v433
      %v435 = vmul.f32 %v434, %v434
      %v436 = vmul.f32 %v435, 0.5
      %v437 = vperm.slane %v274, 5
      %v438 = vmul.f32 %v436, %v437
      %v439 = vperm.slane %v291, 5
      %v440 = vsub.f32 %v439, %v438
      %v441 = vadd.f32 %v414, %v440
      %v442 = vadd.f32 %v440, %v193
      %v443 = vsel %vm307, %v442, -inf
      %444 = vmax.xlane.f32.xlu0 %v443
      %v445 = vpop.xlane.xlu0 %444
      %v446 = vadd.f32 %v428, %v445
      %v447 = vsub.f32 %v442, %v445
      %v448 = vmul.f32 %v447, 1.442695
      %v449 = vpow.pop %v448
      %v450 = vsel %vm307, %v449, 0.0
      %451 = vadd.xlane.f32.xlu0 %v450
      %v452 = vpop.xlane.xlu0 %451
      %v453 = vlog2.pop %v452
      %v454 = vmul.f32 %v453, 0.6931472
      %v455 = vadd.f32 %v446, %v454
      %456 = vset.pattern.permute.xlu0 6
      %457 = vperm.xlu0 %456, %v144
      %v458 = vpop.permute.xlu0 %457
      %v460 = vperm.slane %v210, 6
      %v461 = vsub.f32 %v458, %v460
      %v462 = vmul.f32 %v461, %v461
      %v463 = vmul.f32 %v462, 0.5
      %v464 = vperm.slane %v274, 6
      %v465 = vmul.f32 %v463, %v464
      %v466 = vperm.slane %v291, 6
      %v467 = vsub.f32 %v466, %v465
      %v468 = vadd.f32 %v441, %v467
      %v469 = vadd.f32 %v467, %v193
      %v470 = vsel %vm307, %v469, -inf
      %471 = vmax.xlane.f32.xlu0 %v470
      %v472 = vpop.xlane.xlu0 %471
      %v473 = vadd.f32 %v455, %v472
      %v474 = vsub.f32 %v469, %v472
      %v475 = vmul.f32 %v474, 1.442695
      %v476 = vpow.pop %v475
      %v477 = vsel %vm307, %v476, 0.0
      %478 = vadd.xlane.f32.xlu0 %v477
      %v479 = vpop.xlane.xlu0 %478
      %v480 = vlog2.pop %v479
      %v481 = vmul.f32 %v480, 0.6931472
      %v482 = vadd.f32 %v473, %v481
      %483 = vset.pattern.permute.xlu0 7
      %484 = vperm.xlu0 %483, %v144
      %v485 = vpop.permute.xlu0 %484
      %v487 = vperm.slane %v210, 7
      %v488 = vsub.f32 %v485, %v487
      %v489 = vmul.f32 %v488, %v488
      %v490 = vmul.f32 %v489, 0.5
      %v491 = vperm.slane %v274, 7
      %v492 = vmul.f32 %v490, %v491
      %v493 = vperm.slane %v291, 7
      %v494 = vsub.f32 %v493, %v492
      %v495 = vadd.f32 %v468, %v494
      %v496 = vadd.f32 %v494, %v193
      %v497 = vsel %vm307, %v496, -inf
      %498 = vmax.xlane.f32.xlu0 %v497
      %v499 = vpop.xlane.xlu0 %498
      %v500 = vadd.f32 %v482, %v499
      %v501 = vsub.f32 %v496, %v499
      %v502 = vmul.f32 %v501, 1.442695
      %v503 = vpow.pop %v502
      %v504 = vsel %vm307, %v503, 0.0
      %505 = vadd.xlane.f32.xlu0 %v504
      %v506 = vpop.xlane.xlu0 %505
      %v507 = vlog2.pop %v506
      %v508 = vmul.f32 %v507, 0.6931472
      %v509 = vadd.f32 %v500, %v508
      %v510 = vadd.f32 %v243, 1.837877
      %v511 = vmul.f32 %v510, -0.5
      %512 = vset.pattern.permute.xlu0 8
      %513 = vperm.xlu0 %512, %v144
      %v514 = vpop.permute.xlu0 %513
      %v516 = vperm.slane %v211, 0
      %v517 = vsub.f32 %v514, %v516
      %v518 = vmul.f32 %v517, %v517
      %v519 = vmul.f32 %v518, 0.5
      %v520 = vperm.slane %v275, 0
      %v521 = vmul.f32 %v519, %v520
      %v522 = vperm.slane %v511, 0
      %v523 = vsub.f32 %v522, %v521
      %v524 = vadd.f32 %v495, %v523
      %v525 = vadd.f32 %v523, %v193
      %v526 = vsel %vm307, %v525, -inf
      %527 = vmax.xlane.f32.xlu0 %v526
      %v528 = vpop.xlane.xlu0 %527
      %v529 = vadd.f32 %v509, %v528
      %v530 = vsub.f32 %v525, %v528
      %v531 = vmul.f32 %v530, 1.442695
      %v532 = vpow.pop %v531
      %v533 = vsel %vm307, %v532, 0.0
      %534 = vadd.xlane.f32.xlu0 %v533
      %v535 = vpop.xlane.xlu0 %534
      %v536 = vlog2.pop %v535
      %v537 = vmul.f32 %v536, 0.6931472
      %v538 = vadd.f32 %v529, %v537
      %539 = vset.pattern.permute.xlu0 9
      %540 = vperm.xlu0 %539, %v144
      %v541 = vpop.permute.xlu0 %540
      %v543 = vperm.slane %v211, 1
      %v544 = vsub.f32 %v541, %v543
      %v545 = vmul.f32 %v544, %v544
      %v546 = vmul.f32 %v545, 0.5
      %v547 = vperm.slane %v275, 1
      %v548 = vmul.f32 %v546, %v547
      %v549 = vperm.slane %v511, 1
      %v550 = vsub.f32 %v549, %v548
      %v551 = vadd.f32 %v524, %v550
      %v552 = vadd.f32 %v550, %v193
      %v553 = vsel %vm307, %v552, -inf
      %554 = vmax.xlane.f32.xlu0 %v553
      %v555 = vpop.xlane.xlu0 %554
      %v556 = vadd.f32 %v538, %v555
      %v557 = vsub.f32 %v552, %v555
      %v558 = vmul.f32 %v557, 1.442695
      %v559 = vpow.pop %v558
      %v560 = vsel %vm307, %v559, 0.0
      %561 = vadd.xlane.f32.xlu0 %v560
      %v562 = vpop.xlane.xlu0 %561
      %v563 = vlog2.pop %v562
      %v564 = vmul.f32 %v563, 0.6931472
      %v565 = vadd.f32 %v556, %v564
      %566 = vset.pattern.permute.xlu0 10
      %567 = vperm.xlu0 %566, %v144
      %v568 = vpop.permute.xlu0 %567
      %v570 = vperm.slane %v211, 2
      %v571 = vsub.f32 %v568, %v570
      %v572 = vmul.f32 %v571, %v571
      %v573 = vmul.f32 %v572, 0.5
      %v574 = vperm.slane %v275, 2
      %v575 = vmul.f32 %v573, %v574
      %v576 = vperm.slane %v511, 2
      %v577 = vsub.f32 %v576, %v575
      %v578 = vadd.f32 %v551, %v577
      %v579 = vadd.f32 %v577, %v193
      %v580 = vsel %vm307, %v579, -inf
      %581 = vmax.xlane.f32.xlu0 %v580
      %v582 = vpop.xlane.xlu0 %581
      %v583 = vadd.f32 %v565, %v582
      %v584 = vsub.f32 %v579, %v582
      %v585 = vmul.f32 %v584, 1.442695
      %v586 = vpow.pop %v585
      %v587 = vsel %vm307, %v586, 0.0
      %588 = vadd.xlane.f32.xlu0 %v587
      %v589 = vpop.xlane.xlu0 %588
      %v590 = vlog2.pop %v589
      %v591 = vmul.f32 %v590, 0.6931472
      %v592 = vadd.f32 %v583, %v591
      %593 = vset.pattern.permute.xlu0 11
      %594 = vperm.xlu0 %593, %v144
      %v595 = vpop.permute.xlu0 %594
      %v597 = vperm.slane %v211, 3
      %v598 = vsub.f32 %v595, %v597
      %v599 = vmul.f32 %v598, %v598
      %v600 = vmul.f32 %v599, 0.5
      %v601 = vperm.slane %v275, 3
      %v602 = vmul.f32 %v600, %v601
      %v603 = vperm.slane %v511, 3
      %v604 = vsub.f32 %v603, %v602
      %v605 = vadd.f32 %v578, %v604
      %v606 = vadd.f32 %v604, %v193
      %v607 = vsel %vm307, %v606, -inf
      %608 = vmax.xlane.f32.xlu0 %v607
      %v609 = vpop.xlane.xlu0 %608
      %v610 = vadd.f32 %v592, %v609
      %v611 = vsub.f32 %v606, %v609
      %v612 = vmul.f32 %v611, 1.442695
      %v613 = vpow.pop %v612
      %v614 = vsel %vm307, %v613, 0.0
      %615 = vadd.xlane.f32.xlu0 %v614
      %v616 = vpop.xlane.xlu0 %615
      %v617 = vlog2.pop %v616
      %v618 = vmul.f32 %v617, 0.6931472
      %v619 = vadd.f32 %v610, %v618
      %620 = vset.pattern.permute.xlu0 12
      %621 = vperm.xlu0 %620, %v144
      %v622 = vpop.permute.xlu0 %621
      %v624 = vperm.slane %v211, 4
      %v625 = vsub.f32 %v622, %v624
      %v626 = vmul.f32 %v625, %v625
      %v627 = vmul.f32 %v626, 0.5
      %v628 = vperm.slane %v275, 4
      %v629 = vmul.f32 %v627, %v628
      %v630 = vperm.slane %v511, 4
      %v631 = vsub.f32 %v630, %v629
      %v632 = vadd.f32 %v605, %v631
      %v633 = vadd.f32 %v631, %v193
      %v634 = vsel %vm307, %v633, -inf
      %635 = vmax.xlane.f32.xlu0 %v634
      %v636 = vpop.xlane.xlu0 %635
      %v637 = vadd.f32 %v619, %v636
      %v638 = vsub.f32 %v633, %v636
      %v639 = vmul.f32 %v638, 1.442695
      %v640 = vpow.pop %v639
      %v641 = vsel %vm307, %v640, 0.0
      %642 = vadd.xlane.f32.xlu0 %v641
      %v643 = vpop.xlane.xlu0 %642
      %v644 = vlog2.pop %v643
      %v645 = vmul.f32 %v644, 0.6931472
      %v646 = vadd.f32 %v637, %v645
      %647 = vset.pattern.permute.xlu0 13
      %648 = vperm.xlu0 %647, %v144
      %v649 = vpop.permute.xlu0 %648
      %v651 = vperm.slane %v211, 5
      %v652 = vsub.f32 %v649, %v651
      %v653 = vmul.f32 %v652, %v652
      %v654 = vmul.f32 %v653, 0.5
      %v655 = vperm.slane %v275, 5
      %v656 = vmul.f32 %v654, %v655
      %v657 = vperm.slane %v511, 5
      %v658 = vsub.f32 %v657, %v656
      %v659 = vadd.f32 %v632, %v658
      %v660 = vadd.f32 %v658, %v193
      %v661 = vsel %vm307, %v660, -inf
      %662 = vmax.xlane.f32.xlu0 %v661
      %v663 = vpop.xlane.xlu0 %662
      %v664 = vadd.f32 %v646, %v663
      %v665 = vsub.f32 %v660, %v663
      %v666 = vmul.f32 %v665, 1.442695
      %v667 = vpow.pop %v666
      %v668 = vsel %vm307, %v667, 0.0
      %669 = vadd.xlane.f32.xlu0 %v668
      %v670 = vpop.xlane.xlu0 %669
      %v671 = vlog2.pop %v670
      %v672 = vmul.f32 %v671, 0.6931472
      %v673 = vadd.f32 %v664, %v672
      %674 = vset.pattern.permute.xlu0 14
      %675 = vperm.xlu0 %674, %v144
      %v676 = vpop.permute.xlu0 %675
      %v678 = vperm.slane %v211, 6
      %v679 = vsub.f32 %v676, %v678
      %v680 = vmul.f32 %v679, %v679
      %v681 = vmul.f32 %v680, 0.5
      %v682 = vperm.slane %v275, 6
      %v683 = vmul.f32 %v681, %v682
      %v684 = vperm.slane %v511, 6
      %v685 = vsub.f32 %v684, %v683
      %v686 = vadd.f32 %v659, %v685
      %v687 = vadd.f32 %v685, %v193
      %v688 = vsel %vm307, %v687, -inf
      %689 = vmax.xlane.f32.xlu0 %v688
      %v690 = vpop.xlane.xlu0 %689
      %v691 = vadd.f32 %v673, %v690
      %v692 = vsub.f32 %v687, %v690
      %v693 = vmul.f32 %v692, 1.442695
      %v694 = vpow.pop %v693
      %v695 = vsel %vm307, %v694, 0.0
      %696 = vadd.xlane.f32.xlu0 %v695
      %v697 = vpop.xlane.xlu0 %696
      %v698 = vlog2.pop %v697
      %v699 = vmul.f32 %v698, 0.6931472
      %v700 = vadd.f32 %v691, %v699
      %701 = vset.pattern.permute.xlu0 15
      %702 = vperm.xlu0 %701, %v144
      %v703 = vpop.permute.xlu0 %702
      %v705 = vperm.slane %v211, 7
      %v706 = vsub.f32 %v703, %v705
      %v707 = vmul.f32 %v706, %v706
      %v708 = vmul.f32 %v707, 0.5
      %v709 = vperm.slane %v275, 7
      %v710 = vmul.f32 %v708, %v709
      %v711 = vperm.slane %v511, 7
      %v712 = vsub.f32 %v711, %v710
      %v713 = vadd.f32 %v686, %v712
      %v714 = vadd.f32 %v712, %v193
      %v715 = vsel %vm307, %v714, -inf
      %716 = vmax.xlane.f32.xlu0 %v715
      %v717 = vpop.xlane.xlu0 %716
      %v718 = vadd.f32 %v700, %v717
      %v719 = vsub.f32 %v714, %v717
      %v720 = vmul.f32 %v719, 1.442695
      %v721 = vpow.pop %v720
      %v722 = vsel %vm307, %v721, 0.0
      %723 = vadd.xlane.f32.xlu0 %v722
      %v724 = vpop.xlane.xlu0 %723
      %v725 = vlog2.pop %v724
      %v726 = vmul.f32 %v725, 0.6931472
      %v727 = vadd.f32 %v718, %v726
      %v728 = vadd.f32 %v713, %v193
      %v729 = vsel %vm307, %v728, -inf
      %730 = vmax.xlane.f32.xlu0 %v729
      %v731 = vpop.xlane.xlu0 %730
      %v732 = vsub.f32 %v728, %v731
      %v733 = vmul.f32 %v732, 1.442695
      %v734 = vpow.pop %v733
      %v735 = vsel %vm307, %v734, 0.0
      %736 = vadd.xlane.f32.xlu0 %v735
      %v737 = vpop.xlane.xlu0 %736
      %v738 = vlog2.pop %v737
      %v739 = vmul.f32 %v738, 0.6931472
      %v740 = vadd.f32 %v739, %v731
      %v741 = vsub.f32 %v177, %v740
      %vm742 = vcmask 3072
      %v743 = vsel %vm742, %v741, 0.0
      %744 = vadd.xlane.f32.xlu0 %v743
      %v745 = vpop.xlane.xlu0 %744
      %v746 = vrot.slane %v745, 4
      %v747 = vadd.f32 %v745, %v746
      %v748 = vrot.slane %v747, 2
      %v749 = vadd.f32 %v747, %v748
      %v750 = vrot.slane %v749, 1
      %v751 = vadd.f32 %v749, %v750
      %s752 = vtos %v751
      %s753 = smul.f32 %s752, 0.25
      %s754 = scalar_lea.smem [#allocation12], 0
      %755 = sst [smem:[%s754]] %s753
      %v756 = vsub.f32 %v740, %v727
      %v757 = vsel %vm742, %v756, 0.0
      %758 = vadd.xlane.f32.xlu0 %v757
      %v759 = vpop.xlane.xlu0 %758
      %v760 = vrot.slane %v759, 4
      %v761 = vadd.f32 %v759, %v760
      %v762 = vrot.slane %v761, 2
      %v763 = vadd.f32 %v761, %v762
      %v764 = vrot.slane %v763, 1
      %v765 = vadd.f32 %v763, %v764
      %s766 = vtos %v765
      %s767 = smul.f32 %s766, 0.25
      %s768 = scalar_lea.smem [#allocation12], 1
      %769 = sst [smem:[%s768]] %s767
      %v770 = vsub.f32 %v727, %v183
      %v771 = vsel %vm742, %v770, 0.0
      %772 = vadd.xlane.f32.xlu0 %v771
      %v773 = vpop.xlane.xlu0 %772
      %v774 = vrot.slane %v773, 4
      %v775 = vadd.f32 %v773, %v774
      %v776 = vrot.slane %v775, 2
      %v777 = vadd.f32 %v775, %v776
      %v778 = vrot.slane %v777, 1
      %v779 = vadd.f32 %v777, %v778
      %s780 = vtos %v779
      %s781 = smul.f32 %s780, 0.25
      %s782 = scalar_lea.smem [#allocation12], 2
      %783 = sst [smem:[%s782]] %s781
      %v784 = vld [vmem:[%s4] sm:$0xff]
      %v785 = vld [vmem:[%s4 + $0x8] sm:$0xff]
      %v786 = vld [vmem:[%s5] sm:$0x1]
      %v788 = vperm.slane %v786, 0
      %vm790 = vcmask 130048
      %v791 = vsel %vm790, %v144, 0
      %793 = vmatpush.msra.mxu0 0.0
      %794 = vmatpush.msra.mxu0 0.0
      %795 = vmatpush.msra.mxu0 0.0
      %796 = vmatpush.msra.mxu0 0.0
      %797 = vmatpush.msra.mxu0 0.0
      %798 = vmatpush.msra.mxu0 0.0
      %799 = vmatpush.msra.mxu0 0.0
      %800 = vmatpush.msra.mxu0 0.0
      %801 = vmatpush.msra.mxu0 0.0
      %802 = vmatpush.msra.mxu0 0.0
      %803 = vmatpush.msra.mxu0 0.0
      %804 = vmatpush.msra.mxu0 0.0
      %805 = vmatpush.msra.mxu0 0.0
      %806 = vmatpush.msra.mxu0 0.0
      %807 = vmatpush.msra.mxu0 %v785
      %808 = vmatpush.msra.mxu0 %v784
      %809 = vmatmul.f32.gmra.mxu0 %v791
      %v810 = vpop.f32.mrf.mxu0
      %v811 = vadd.f32 %v788, %v810
      %812 = vdwg.mxu0
      %813 = vst.msk [vmem:[#allocation9] sm:$0xf] %vm145, %v811
      %v814 = vadd.f32 %v811, 0.0
      %816 = vrot.lane.b32.xlu0 %v811, 112
      %v817 = vpop.permute.xlu0 %816
      %s819 = scalar_lea.vmem [#allocation9], 4
      %820 = vst.msk [vmem:[%s819] sm:$0xf] %vm145, %v817
      %v821 = vadd.f32 %v814, %v817
      %822 = vrot.lane.b32.xlu0 %v811, 96
      %v823 = vpop.permute.xlu0 %822
      %s825 = scalar_lea.vmem [#allocation9], 8
      %826 = vst.msk [vmem:[%s825] sm:$0xf] %vm145, %v823
      %v827 = vadd.f32 %v821, %v823
      %v828 = vmul.f32 %v827, 0.33333334
      %829 = vst.msk [vmem:[#allocation11] sm:$0xf] %vm145, %v828
    $region33: #{tpu_custom_call.1} parent=1 // pred_fallthru
      _
    // Predicated region
    $region34: #{tpu_custom_call.1} parent=1 // pred_check
      _
    $region35: #{tpu_custom_call.1} parent=1 // pred_check_branch
      %831 = sbr.rel (0) target = $region37
    $region36: #{tpu_custom_call.1} parent=1 // pred_region
      %833 = vsyncadd [#allocation4], 0
      %s835 = sshll.u32 [#allocation3], 4
      %s836 = int_to_ptr.vmem [resolvable:$true] %s835
      %s837 = sshll.u32 %s6, 4
      %s838 = int_to_ptr.hbm [resolvable:$true] %s837
      %840 = dma.vmem_to_hbm [thread:$0]  %s836, 64, %s838, [#allocation4]
    $region37: #{tpu_custom_call.1} parent=1 // pred_fallthru
      _
    // Predicated region
    $region38: #{tpu_custom_call.1} parent=1 // pred_check
      _
    $region39: #{tpu_custom_call.1} parent=1 // pred_check_branch
      %842 = sbr.rel (0) target = $region41
    $region40: #{tpu_custom_call.1} parent=1 // pred_region
      %844 = vsyncadd [#allocation7], 0
      %s846 = sshll.u32 [#allocation6], 4
      %s847 = int_to_ptr.vmem [resolvable:$true] %s846
      %s848 = sshll.u32 %s7, 4
      %s849 = int_to_ptr.hbm [resolvable:$true] %s848
      %851 = dma.vmem_to_hbm [thread:$0]  %s847, 64, %s849, [#allocation7]
    $region41: #{tpu_custom_call.1} parent=1 // pred_fallthru
      _
    // Predicated region
    $region42: #{tpu_custom_call.1} parent=1 // pred_check
      _
    $region43: #{tpu_custom_call.1} parent=1 // pred_check_branch
      %853 = sbr.rel (0) target = $region45
    $region44: #{tpu_custom_call.1} parent=1 // pred_region
      %855 = vsyncadd [#allocation7], 0
      %s857 = sshll.u32 [#allocation8], 4
      %s858 = int_to_ptr.vmem [resolvable:$true] %s857
      %s859 = sshll.u32 %s8, 4
      %s860 = int_to_ptr.hbm [resolvable:$true] %s859
      %862 = dma.vmem_to_hbm [thread:$0]  %s858, 64, %s860, [#allocation7]
    $region45: #{tpu_custom_call.1} parent=1 // pred_fallthru
      _
    // Predicated region
    $region46: #{tpu_custom_call.1} parent=1 // pred_check
      _
    $region47: #{tpu_custom_call.1} parent=1 // pred_check_branch
      %864 = sbr.rel (0) target = $region49
    $region48: #{tpu_custom_call.1} parent=1 // pred_region
      %866 = vsyncadd [#allocation10], 0
      %s867 = sshll.u32 [#allocation9], 4
      %s868 = int_to_ptr.vmem [resolvable:$true] %s867
      %s869 = sshll.u32 %s9, 4
      %s870 = int_to_ptr.hbm [resolvable:$true] %s869
      %875 = dma.vmem_to_hbm [thread:$0]  %s868, 192, %s870, [#allocation10], 64, 64, 4
    $region49: #{tpu_custom_call.1} parent=1 // pred_fallthru
      _
    // Predicated region
    $region50: #{tpu_custom_call.1} parent=1 // pred_check
      _
    $region51: #{tpu_custom_call.1} parent=1 // pred_check_branch
      %877 = sbr.rel (0) target = $region53
    $region52: #{tpu_custom_call.1} parent=1 // pred_region
      %879 = vsyncadd [#allocation10], 0
      %s881 = sshll.u32 [#allocation11], 4
      %s882 = int_to_ptr.vmem [resolvable:$true] %s881
      %s883 = sshll.u32 %s10, 4
      %s884 = int_to_ptr.hbm [resolvable:$true] %s883
      %886 = dma.vmem_to_hbm [thread:$0]  %s882, 64, %s884, [#allocation10]
    $region53: #{tpu_custom_call.1} parent=1 // pred_fallthru
      _
    // Predicated region
    $region54: #{tpu_custom_call.1} parent=1 // pred_check
      _
    $region55: #{tpu_custom_call.1} parent=1 // pred_check_branch
      %888 = sbr.rel (0) target = $region57
    $region56: #{tpu_custom_call.1} parent=1 // pred_region
      %890 = vsyncadd [#allocation5], 0
      %s892 = sshll.u32 %s11, 4
      %s893 = int_to_ptr.hbm [resolvable:$true] %s892
      %895 = dma.smem_to_hbm [#allocation12], 16, %s893, [#allocation5]
    $region57: #{tpu_custom_call.1} parent=1 // pred_fallthru
      _
    // Predicated region
    $region58: #{tpu_custom_call.1} parent=1 // pred_check
      _
    $region59: #{tpu_custom_call.1} parent=1 // pred_check_branch
      %897 = sbr.rel (0) target = $region61
    $region60: #{tpu_custom_call.1} parent=1 // pred_region
      %899 = dma.done [#allocation4], 64
    $region61: #{tpu_custom_call.1} parent=1 // pred_fallthru
      _
    // Predicated region
    $region62: #{tpu_custom_call.1} parent=1 // pred_check
      _
    $region63: #{tpu_custom_call.1} parent=1 // pred_check_branch
      %901 = sbr.rel (0) target = $region65
    $region64: #{tpu_custom_call.1} parent=1 // pred_region
      %903 = dma.done [#allocation7], 64
    $region65: #{tpu_custom_call.1} parent=1 // pred_fallthru
      _
    // Predicated region
    $region66: #{tpu_custom_call.1} parent=1 // pred_check
      _
    $region67: #{tpu_custom_call.1} parent=1 // pred_check_branch
      %905 = sbr.rel (0) target = $region69
    $region68: #{tpu_custom_call.1} parent=1 // pred_region
      %907 = dma.done [#allocation7], 64
    $region69: #{tpu_custom_call.1} parent=1 // pred_fallthru
      _
    // Predicated region
    $region70: #{tpu_custom_call.1} parent=1 // pred_check
      _
    $region71: #{tpu_custom_call.1} parent=1 // pred_check_branch
      %909 = sbr.rel (0) target = $region73
    $region72: #{tpu_custom_call.1} parent=1 // pred_region
      %911 = dma.done [#allocation10], 192
    $region73: #{tpu_custom_call.1} parent=1 // pred_fallthru
      _
    // Predicated region
    $region74: #{tpu_custom_call.1} parent=1 // pred_check
      _
    $region75: #{tpu_custom_call.1} parent=1 // pred_check_branch
      %913 = sbr.rel (0) target = $region77
    $region76: #{tpu_custom_call.1} parent=1 // pred_region
      %915 = dma.done [#allocation10], 64
    $region77: #{tpu_custom_call.1} parent=1 // pred_fallthru
      _
    // Predicated region
    $region78: #{tpu_custom_call.1} parent=1 // pred_check
      _
    $region79: #{tpu_custom_call.1} parent=1 // pred_check_branch
      %917 = sbr.rel (0) target = $region81
    $region80: #{tpu_custom_call.1} parent=1 // pred_region
      %919 = dma.done [#allocation5], 16
    $region81: #{tpu_custom_call.1} parent=1 // pred_fallthru
      _
    %920 = sfence
    %921 = vsyncpa [#allocation4], 1
    %922 = vsyncpa [#allocation7], 1
    %923 = vsyncpa [#allocation10], 1
    %924 = vsyncpa [#allocation5], 1

</llo_original>
